<compile_context>
chip_gen: v7x
topology: tpu7x:2x2x1
jax: 0.10.0
libtpu: 0.0.40
codegen_flags: <defaults>
</compile_context>

<pallas_src>
import functools

import jax
import jax.numpy as jnp
from jax.experimental import pallas as pl
from jax.experimental.pallas import tpu as pltpu

KSIZE = 7
PAD = KSIZE // 2
LANE = 128   # TPU lane width


def _sa_kernel(w_ref, x_ref, o_ref, sum_ref, max_ref, *,
               H, W, HW, L, NB, tc, rem, chunk):
    # w_ref:   SMEM (2*7*7,) f32 conv weight [ci, kh, kw]; avg row pre-scaled by 1/C
    # x_ref:   VMEM (NB, tc, HW) input block (batch group, channel tile, flat spatial)
    # o_ref:   VMEM (NB, HW) output block (written on the last channel step only)
    # sum_ref / max_ref: VMEM (NB, L) f32 running channel sum / max
    c_idx = pl.program_id(1)
    n_csteps = pl.num_programs(1)

    @pl.when(c_idx == 0)
    def _():
        sum_ref[...] = jnp.zeros(sum_ref.shape, jnp.float32)
        max_ref[...] = jnp.full(max_ref.shape, -jnp.inf, jnp.float32)

    def reduce_and_accumulate(nch):
        # Sum / max over channels [0, nch) of the current block (nch static).
        nfull = nch // chunk
        tail = nch % chunk
        psum = jnp.zeros((NB, HW), jnp.float32)
        pmax = jnp.full((NB, HW), -jnp.inf, jnp.float32)
        if nfull > 0:
            def body(k, carry):
                s, m = carry
                off = pl.multiple_of(k * chunk, chunk)
                blk = x_ref[:, pl.ds(off, chunk), :].astype(jnp.float32)
                return s + blk, jnp.maximum(m, blk)
            init = (jnp.zeros((NB, chunk, HW), jnp.float32),
                    jnp.full((NB, chunk, HW), -jnp.inf, jnp.float32))
            s3, m3 = jax.lax.fori_loop(0, nfull, body, init,
                                       unroll=bool(nfull <= 8))
            psum = jnp.sum(s3, axis=1)
            pmax = jnp.max(m3, axis=1)
        if tail > 0:
            blk = x_ref[:, pl.ds(nfull * chunk, tail), :].astype(jnp.float32)
            psum = psum + jnp.sum(blk, axis=1)
            pmax = jnp.maximum(pmax, jnp.max(blk, axis=1))
        sum_ref[:, :HW] = sum_ref[:, :HW] + psum
        max_ref[:, :HW] = jnp.maximum(max_ref[:, :HW], pmax)

    if rem == 0:
        reduce_and_accumulate(tc)
    else:
        # Last channel block is partial; its valid channel count (rem) is
        # static, so we simply read fewer channels there (no masking).
        @pl.when(c_idx < n_csteps - 1)
        def _():
            reduce_and_accumulate(tc)

        @pl.when(c_idx == n_csteps - 1)
        def _():
            reduce_and_accumulate(rem)

    # ---- finalize: 7x7 "same" conv + sigmoid, register/XLU resident ---------
    @pl.when(c_idx == n_csteps - 1)
    def _():
        # 1/C is folded into the avg-channel weights, so the raw channel sum
        # feeds the conv directly.
        avg = sum_ref[...]                               # (NB, L) f32
        mx = max_ref[...]                                # (NB, L) f32

        flat = jax.lax.broadcasted_iota(jnp.int32, (NB, L), 1).astype(jnp.float32)
        # Exact floor-div for any realistic plane size (flat < 2^22): the +0.5
        # keeps the true quotient's fractional part >= 0.5/W, far outside the
        # f32 rounding error of a multiply-by-reciprocal.
        rid = jnp.floor((flat + 0.5) * (1.0 / W))        # row index (f32 int)
        cid = flat - rid * W                             # col index (f32 int)

        # Column-boundary masks depend only on dw: build once, reuse per row.
        col_ok = {}
        for dw in range(-PAD, PAD + 1):
            if dw < 0:
                col_ok[dw] = cid >= -dw
            elif dw > 0:
                col_ok[dw] = cid < (W - dw)
            else:
                col_ok[dw] = None

        def lane_roll(v, shift):
            s = shift % L
            return v if s == 0 else pltpu.roll(v, s, 1)

        acc = jnp.zeros((NB, L), jnp.float32)
        for dh in range(-PAD, PAD + 1):
            if dh == 0:
                a_row, m_row = avg, mx
            else:
                row_ok = jnp.logical_and(rid >= -dh, rid < (H - dh))
                # Row-shifted strips built once per dh, reused for all 7 dw.
                a_row = jnp.where(row_ok, lane_roll(avg, -dh * W), 0.0)
                m_row = jnp.where(row_ok, lane_roll(mx, -dh * W), 0.0)
            kh = dh + PAD
            for dw in range(-PAD, PAD + 1):
                kw = dw + PAD
                wa = w_ref[kh * KSIZE + kw]                      # avg-channel tap
                wm = w_ref[KSIZE * KSIZE + kh * KSIZE + kw]      # max-channel tap
                a_t = lane_roll(a_row, -dw)
                m_t = lane_roll(m_row, -dw)
                term = wa * a_t + wm * m_t
                if col_ok[dw] is not None:
                    term = jnp.where(col_ok[dw], term, 0.0)
                acc = acc + term

        o_ref[...] = jax.nn.sigmoid(acc[:, :HW]).astype(o_ref.dtype)


def spatial_attention(x, w, *, c_block_bytes=None):
    """x: (N, C, H, W); w: (1, 2, 7, 7) -> (N, 1, H, W)."""
    N, C, H, W = x.shape
    HW = H * W
    L = pl.cdiv(HW, LANE) * LANE
    itemsize = x.dtype.itemsize
    packing = max(1, 4 // itemsize)          # values per 32-bit sublane slot
    nb_max = 8 * packing                     # 8 f32 / 16 bf16 / 32 int8
    chunk = 8 * packing                      # channels per inner reduce step

    # ---- batch grouping: never produce a partial leading-dim block ----------
    xr = x.reshape(N, C, HW)                 # free for a contiguous NCHW tensor
    nb = None
    for cand in range(nb_max, 0, -8):
        if N % cand == 0:
            nb = cand
            break
    if nb is None:
        if N < nb_max:
            nb = N                           # single full-batch group (legal: full dim)
        else:
            # Rare awkward batch (no multiple-of-8 divisor): pad once.
            np_ = pl.cdiv(N, 8) * 8
            xr = jnp.pad(xr, ((0, np_ - N), (0, 0), (0, 0)))
            nb = 8
    Np = xr.shape[0]
    bsteps = Np // nb

    # ---- generation-aware VMEM budget / channel tile -------------------------
    try:
        vmem_cap = int(pltpu.get_tpu_info().vmem_capacity_bytes)
    except Exception:
        vmem_cap = 64 * 2**20                # conservative: v7x per-TC VMEM
    if c_block_bytes is None:
        # Double-buffered x-block budget: ~48 MiB on 128 MiB parts (v5e/v6e),
        # ~24 MiB on 64 MiB parts (v7x).
        c_block_bytes = min(48 * 2**20, (vmem_cap * 3) // 8)

    per_c = nb * HW * itemsize               # bytes per channel per buffer
    tc_cap = max(chunk, (c_block_bytes // (2 * per_c)) // chunk * chunk)
    tc = C if C <= tc_cap else tc_cap        # tc == C or a multiple of `chunk`
    rem = 0 if tc == C else C % tc
    csteps = pl.cdiv(C, tc)

    # Fold 1/C into the avg-channel conv weights (frees a full-plane multiply).
    w2 = w.reshape(2, KSIZE * KSIZE).astype(jnp.float32)
    w_flat = (w2 * jnp.array([[1.0 / C], [1.0]], jnp.float32)).reshape(-1)

    vmem_needed = (2 * tc * per_c                    # x block, double buffered
                   + 2 * nb * HW * itemsize          # output block
                   + 2 * nb * L * 4                  # sum / max scratch
                   + 10 * nb * L * 4                 # finalize temporaries
                   + (2 << 20))                      # headroom
    vmem_limit = int(min(max(vmem_needed, 32 * 2**20), vmem_cap - (2 << 20)))

    kernel = functools.partial(_sa_kernel, H=H, W=W, HW=HW, L=L,
                               NB=nb, tc=tc, rem=rem, chunk=chunk)

    # TODO(synk): for v7x small-batch inputs (bsteps == 1) the second TensorCore
    # idles; splitting C across cores + a tiny combine pass would recover it.
    out = pl.pallas_call(
        kernel,
        out_shape=jax.ShapeDtypeStruct((Np, HW), x.dtype),
        grid=(bsteps, csteps),               # reduction (C) axis last
        in_specs=[
            pl.BlockSpec(memory_space=pltpu.MemorySpace.SMEM),        # weights
            pl.BlockSpec((nb, tc, HW), lambda b, c: (b, c, 0)),       # x block
        ],
        out_specs=pl.BlockSpec((nb, HW), lambda b, c: (b, 0)),
        scratch_shapes=[
            pltpu.VMEM((nb, L), jnp.float32),   # running channel sum
            pltpu.VMEM((nb, L), jnp.float32),   # running channel max
        ],
        compiler_params=pltpu.CompilerParams(
            dimension_semantics=("parallel", "arbitrary"),
            vmem_limit_bytes=vmem_limit),
    )(w_flat, xr)

    return out[:N].reshape(N, 1, H, W)


def reference_forward(x, w):
    """Pure-JAX reference matching the PyTorch module exactly."""
    avg = jnp.mean(x, axis=1, keepdims=True)
    mx = jnp.max(x, axis=1, keepdims=True)
    xc = jnp.concatenate([avg, mx], axis=1)          # (N, 2, H, W)
    y = jax.lax.conv_general_dilated(
        xc, w, window_strides=(1, 1), padding=[(PAD, PAD), (PAD, PAD)],
        dimension_numbers=("NCHW", "OIHW", "NCHW"))
    return jax.nn.sigmoid(y)


if __name__ == "__main__":
    key = jax.random.PRNGKey(0)
    kx, kw = jax.random.split(key)

    # Small shapes consistent with the module: N=2, C=4, H=W=16.
    N, C, H, W = 2, 4, 16, 16
    x = jax.random.normal(kx, (N, C, H, W), dtype=jnp.float32)

    # Conv2d(2, 1, 7, bias=False) weight, uniform in +/- 1/sqrt(fan_in).
    fan_in = 2 * KSIZE * KSIZE
    bound = 1.0 / float(fan_in) ** 0.5
    w = jax.random.uniform(kw, (1, 2, KSIZE, KSIZE), jnp.float32,
                           minval=-bound, maxval=bound)

    out = spatial_attention(x, w)
    out = jax.block_until_ready(out)

    ref = reference_forward(x, w)
    assert out.shape == (N, 1, H, W)
    err = float(jnp.max(jnp.abs(out - ref)))
    assert err < 1e-5, f"max abs err {err}"

    print("KERNEL_OK")
</pallas_src>

<mosaic_0001>
module attributes {stable_mosaic.version = 11 : i64} {
  func.func @_sa_kernel(%arg0: i32, %arg1: i32, %arg2: memref<98xf32, #tpu.memory_space<smem>>, %arg3: memref<2x4x256xf32, #tpu.memory_space<vmem>>, %arg4: memref<2x256xf32, #tpu.memory_space<vmem>>, %arg5: memref<2x256xf32, #tpu.memory_space<vmem>>, %arg6: memref<2x256xf32, #tpu.memory_space<vmem>>) attributes {dimension_semantics = [#tpu.dimension_semantics<parallel>, #tpu.dimension_semantics<arbitrary>], iteration_bounds = array<i64: 1, 1>, scalar_prefetch = 0 : i64, scratch_operands = 2 : i64, tpu.core_type = #tpu.core_type<tc>, window_params = [{transform_indices = @transform_0, window_bounds = array<i64: 98>}, {transform_indices = @transform_1, window_bounds = array<i64: 2, 4, 256>}, {transform_indices = @transform_2, window_bounds = array<i64: 2, 256>}]} {
    %c0_i32 = arith.constant 0 : i32
    %0 = arith.cmpi eq, %arg1, %c0_i32 : i32
    %1 = arith.extui %0 : i1 to i32
    %c0_i32_0 = arith.constant 0 : i32
    %2 = arith.cmpi ne, %1, %c0_i32_0 : i32
    scf.if %2 {
      %cst_16 = arith.constant 0.000000e+00 : f32
      %19 = vector.broadcast %cst_16 : f32 to vector<2x256xf32>
      %c0_17 = arith.constant 0 : index
      %c0_18 = arith.constant 0 : index
      %20 = vector.load %arg5[%c0_17, %c0_18] : memref<2x256xf32, #tpu.memory_space<vmem>>, vector<2x256xf32>
      tpu.vector_store %arg5[%c0_17, %c0_18], %19 {strides = array<i32>} : memref<2x256xf32, #tpu.memory_space<vmem>>, vector<2x256xf32>,
      %cst_19 = arith.constant 0xFF800000 : f32
      %21 = vector.broadcast %cst_19 : f32 to vector<2x256xf32>
      %c0_20 = arith.constant 0 : index
      %c0_21 = arith.constant 0 : index
      %22 = vector.load %arg6[%c0_20, %c0_21] : memref<2x256xf32, #tpu.memory_space<vmem>>, vector<2x256xf32>
      tpu.vector_store %arg6[%c0_20, %c0_21], %21 {strides = array<i32>} : memref<2x256xf32, #tpu.memory_space<vmem>>, vector<2x256xf32>,
    } else {
    }
    %cst = arith.constant 0.000000e+00 : f32
    %3 = vector.broadcast %cst : f32 to vector<2x256xf32>
    %cst_1 = arith.constant 0xFF800000 : f32
    %4 = vector.broadcast %cst_1 : f32 to vector<2x256xf32>
    %c0 = arith.constant 0 : index
    %c0_2 = arith.constant 0 : index
    %c0_3 = arith.constant 0 : index
    %5 = vector.load %arg3[%c0, %c0_2, %c0_3] : memref<2x4x256xf32, #tpu.memory_space<vmem>>, vector<2x4x256xf32>
    %cst_4 = arith.constant dense<0.000000e+00> : vector<2x256xf32>
    %6 = vector.multi_reduction <add>, %5, %cst_4 [1] : vector<2x4x256xf32> to vector<2x256xf32>
    %7 = arith.addf %3, %6 : vector<2x256xf32>
    %cst_5 = arith.constant dense<0xFF800000> : vector<2x256xf32>
    %8 = vector.multi_reduction <maximumf>, %5, %cst_5 [1] : vector<2x4x256xf32> to vector<2x256xf32>
    %9 = arith.maximumf %4, %8 : vector<2x256xf32>
    %c0_6 = arith.constant 0 : index
    %c0_7 = arith.constant 0 : index
    %10 = vector.load %arg5[%c0_6, %c0_7] : memref<2x256xf32, #tpu.memory_space<vmem>>, vector<2x256xf32>
    %11 = arith.addf %10, %7 : vector<2x256xf32>
    %c0_8 = arith.constant 0 : index
    %c0_9 = arith.constant 0 : index
    %12 = vector.load %arg5[%c0_8, %c0_9] : memref<2x256xf32, #tpu.memory_space<vmem>>, vector<2x256xf32>
    tpu.vector_store %arg5[%c0_8, %c0_9], %11 {strides = array<i32>} : memref<2x256xf32, #tpu.memory_space<vmem>>, vector<2x256xf32>,
    %c0_10 = arith.constant 0 : index
    %c0_11 = arith.constant 0 : index
    %13 = vector.load %arg6[%c0_10, %c0_11] : memref<2x256xf32, #tpu.memory_space<vmem>>, vector<2x256xf32>
    %14 = arith.maximumf %13, %9 : vector<2x256xf32>
    %c0_12 = arith.constant 0 : index
    %c0_13 = arith.constant 0 : index
    %15 = vector.load %arg6[%c0_12, %c0_13] : memref<2x256xf32, #tpu.memory_space<vmem>>, vector<2x256xf32>
    tpu.vector_store %arg6[%c0_12, %c0_13], %14 {strides = array<i32>} : memref<2x256xf32, #tpu.memory_space<vmem>>, vector<2x256xf32>,
    %c0_i32_14 = arith.constant 0 : i32
    %16 = arith.cmpi eq, %arg1, %c0_i32_14 : i32
    %17 = arith.extui %16 : i1 to i32
    %c0_i32_15 = arith.constant 0 : i32
    %18 = arith.cmpi ne, %17, %c0_i32_15 : i32
    scf.if %18 {
      %c0_16 = arith.constant 0 : index
      %c0_17 = arith.constant 0 : index
      %19 = vector.load %arg5[%c0_16, %c0_17] : memref<2x256xf32, #tpu.memory_space<vmem>>, vector<2x256xf32>
      %c0_18 = arith.constant 0 : index
      %c0_19 = arith.constant 0 : index
      %20 = vector.load %arg6[%c0_18, %c0_19] : memref<2x256xf32, #tpu.memory_space<vmem>>, vector<2x256xf32>
      %21 = tpu.iota {dimensions = array<i32: 1>} : vector<2x256xi32>
      %22 = arith.sitofp %21 : vector<2x256xi32> to vector<2x256xf32>
      %cst_20 = arith.constant 5.000000e-01 : f32
      %23 = vector.broadcast %cst_20 : f32 to vector<2x256xf32>
      %24 = arith.addf %22, %23 : vector<2x256xf32>
      %cst_21 = arith.constant 6.250000e-02 : f32
      %25 = vector.broadcast %cst_21 : f32 to vector<2x256xf32>
      %26 = arith.mulf %24, %25 : vector<2x256xf32>
      %27 = math.floor %26 : vector<2x256xf32>
      %cst_22 = arith.constant 1.600000e+01 : f32
      %28 = vector.broadcast %cst_22 : f32 to vector<2x256xf32>
      %29 = arith.mulf %27, %28 : vector<2x256xf32>
      %30 = arith.subf %22, %29 : vector<2x256xf32>
      %cst_23 = arith.constant 3.000000e+00 : f32
      %31 = vector.broadcast %cst_23 : f32 to vector<2x256xf32>
      %32 = arith.cmpf oge, %30, %31 : vector<2x256xf32>
      %cst_24 = arith.constant 2.000000e+00 : f32
      %33 = vector.broadcast %cst_24 : f32 to vector<2x256xf32>
      %34 = arith.cmpf oge, %30, %33 : vector<2x256xf32>
      %cst_25 = arith.constant 1.000000e+00 : f32
      %35 = vector.broadcast %cst_25 : f32 to vector<2x256xf32>
      %36 = arith.cmpf oge, %30, %35 : vector<2x256xf32>
      %cst_26 = arith.constant 1.500000e+01 : f32
      %37 = vector.broadcast %cst_26 : f32 to vector<2x256xf32>
      %38 = arith.cmpf olt, %30, %37 : vector<2x256xf32>
      %cst_27 = arith.constant 1.400000e+01 : f32
      %39 = vector.broadcast %cst_27 : f32 to vector<2x256xf32>
      %40 = arith.cmpf olt, %30, %39 : vector<2x256xf32>
      %cst_28 = arith.constant 1.300000e+01 : f32
      %41 = vector.broadcast %cst_28 : f32 to vector<2x256xf32>
      %42 = arith.cmpf olt, %30, %41 : vector<2x256xf32>
      %cst_29 = arith.constant 0.000000e+00 : f32
      %43 = vector.broadcast %cst_29 : f32 to vector<2x256xf32>
      %cst_30 = arith.constant 3.000000e+00 : f32
      %44 = vector.broadcast %cst_30 : f32 to vector<2x256xf32>
      %45 = arith.cmpf oge, %27, %44 : vector<2x256xf32>
      %cst_31 = arith.constant 1.900000e+01 : f32
      %46 = vector.broadcast %cst_31 : f32 to vector<2x256xf32>
      %47 = arith.cmpf olt, %27, %46 : vector<2x256xf32>
      %48 = arith.andi %45, %47 : vector<2x256xi1>
      %c48_i32 = arith.constant 48 : i32
      %49 = tpu.dynamic_rotate %19 by %c48_i32 dim 1 : vector<2x256xf32>, i32 -> vector<2x256xf32>
      %cst_32 = arith.constant 0.000000e+00 : f32
      %50 = vector.broadcast %cst_32 : f32 to vector<2x256xf32>
      %51 = arith.select %48, %49, %50 : vector<2x256xi1>, vector<2x256xf32>
      %c48_i32_33 = arith.constant 48 : i32
      %52 = tpu.dynamic_rotate %20 by %c48_i32_33 dim 1 : vector<2x256xf32>, i32 -> vector<2x256xf32>
      %cst_34 = arith.constant 0.000000e+00 : f32
      %53 = vector.broadcast %cst_34 : f32 to vector<2x256xf32>
      %54 = arith.select %48, %52, %53 : vector<2x256xi1>, vector<2x256xf32>
      %c0_35 = arith.constant 0 : index
      %55 = memref.load %arg2[%c0_35] : memref<98xf32, #tpu.memory_space<smem>>
      %c49 = arith.constant 49 : index
      %56 = memref.load %arg2[%c49] : memref<98xf32, #tpu.memory_space<smem>>
      %c3_i32 = arith.constant 3 : i32
      %57 = tpu.dynamic_rotate %51 by %c3_i32 dim 1 : vector<2x256xf32>, i32 -> vector<2x256xf32>
      %c3_i32_36 = arith.constant 3 : i32
      %58 = tpu.dynamic_rotate %54 by %c3_i32_36 dim 1 : vector<2x256xf32>, i32 -> vector<2x256xf32>
      %59 = vector.broadcast %55 : f32 to vector<2x256xf32>
      %60 = arith.mulf %59, %57 : vector<2x256xf32>
      %61 = vector.broadcast %56 : f32 to vector<2x256xf32>
      %62 = arith.mulf %61, %58 : vector<2x256xf32>
      %63 = arith.addf %60, %62 : vector<2x256xf32>
      %cst_37 = arith.constant 0.000000e+00 : f32
      %64 = vector.broadcast %cst_37 : f32 to vector<2x256xf32>
      %65 = arith.select %32, %63, %64 : vector<2x256xi1>, vector<2x256xf32>
      %66 = arith.addf %43, %65 : vector<2x256xf32>
      %c1 = arith.constant 1 : index
      %67 = memref.load %arg2[%c1] : memref<98xf32, #tpu.memory_space<smem>>
      %c50 = arith.constant 50 : index
      %68 = memref.load %arg2[%c50] : memref<98xf32, #tpu.memory_space<smem>>
      %c2_i32 = arith.constant 2 : i32
      %69 = tpu.dynamic_rotate %51 by %c2_i32 dim 1 : vector<2x256xf32>, i32 -> vector<2x256xf32>
      %c2_i32_38 = arith.constant 2 : i32
      %70 = tpu.dynamic_rotate %54 by %c2_i32_38 dim 1 : vector<2x256xf32>, i32 -> vector<2x256xf32>
      %71 = vector.broadcast %67 : f32 to vector<2x256xf32>
      %72 = arith.mulf %71, %69 : vector<2x256xf32>
      %73 = vector.broadcast %68 : f32 to vector<2x256xf32>
      %74 = arith.mulf %73, %70 : vector<2x256xf32>
      %75 = arith.addf %72, %74 : vector<2x256xf32>
      %cst_39 = arith.constant 0.000000e+00 : f32
      %76 = vector.broadcast %cst_39 : f32 to vector<2x256xf32>
      %77 = arith.select %34, %75, %76 : vector<2x256xi1>, vector<2x256xf32>
      %78 = arith.addf %66, %77 : vector<2x256xf32>
      %c2 = arith.constant 2 : index
      %79 = memref.load %arg2[%c2] : memref<98xf32, #tpu.memory_space<smem>>
      %c51 = arith.constant 51 : index
      %80 = memref.load %arg2[%c51] : memref<98xf32, #tpu.memory_space<smem>>
      %c1_i32 = arith.constant 1 : i32
      %81 = tpu.dynamic_rotate %51 by %c1_i32 dim 1 : vector<2x256xf32>, i32 -> vector<2x256xf32>
      %c1_i32_40 = arith.constant 1 : i32
      %82 = tpu.dynamic_rotate %54 by %c1_i32_40 dim 1 : vector<2x256xf32>, i32 -> vector<2x256xf32>
      %83 = vector.broadcast %79 : f32 to vector<2x256xf32>
      %84 = arith.mulf %83, %81 : vector<2x256xf32>
      %85 = vector.broadcast %80 : f32 to vector<2x256xf32>
      %86 = arith.mulf %85, %82 : vector<2x256xf32>
      %87 = arith.addf %84, %86 : vector<2x256xf32>
      %cst_41 = arith.constant 0.000000e+00 : f32
      %88 = vector.broadcast %cst_41 : f32 to vector<2x256xf32>
      %89 = arith.select %36, %87, %88 : vector<2x256xi1>, vector<2x256xf32>
      %90 = arith.addf %78, %89 : vector<2x256xf32>
      %c3 = arith.constant 3 : index
      %91 = memref.load %arg2[%c3] : memref<98xf32, #tpu.memory_space<smem>>
      %c52 = arith.constant 52 : index
      %92 = memref.load %arg2[%c52] : memref<98xf32, #tpu.memory_space<smem>>
      %93 = vector.broadcast %91 : f32 to vector<2x256xf32>
      %94 = arith.mulf %93, %51 : vector<2x256xf32>
      %95 = vector.broadcast %92 : f32 to vector<2x256xf32>
      %96 = arith.mulf %95, %54 : vector<2x256xf32>
      %97 = arith.addf %94, %96 : vector<2x256xf32>
      %98 = arith.addf %90, %97 : vector<2x256xf32>
      %c4 = arith.constant 4 : index
      %99 = memref.load %arg2[%c4] : memref<98xf32, #tpu.memory_space<smem>>
      %c53 = arith.constant 53 : index
      %100 = memref.load %arg2[%c53] : memref<98xf32, #tpu.memory_space<smem>>
      %c255_i32 = arith.constant 255 : i32
      %101 = tpu.dynamic_rotate %51 by %c255_i32 dim 1 : vector<2x256xf32>, i32 -> vector<2x256xf32>
      %c255_i32_42 = arith.constant 255 : i32
      %102 = tpu.dynamic_rotate %54 by %c255_i32_42 dim 1 : vector<2x256xf32>, i32 -> vector<2x256xf32>
      %103 = vector.broadcast %99 : f32 to vector<2x256xf32>
      %104 = arith.mulf %103, %101 : vector<2x256xf32>
      %105 = vector.broadcast %100 : f32 to vector<2x256xf32>
      %106 = arith.mulf %105, %102 : vector<2x256xf32>
      %107 = arith.addf %104, %106 : vector<2x256xf32>
      %cst_43 = arith.constant 0.000000e+00 : f32
      %108 = vector.broadcast %cst_43 : f32 to vector<2x256xf32>
      %109 = arith.select %38, %107, %108 : vector<2x256xi1>, vector<2x256xf32>
      %110 = arith.addf %98, %109 : vector<2x256xf32>
      %c5 = arith.constant 5 : index
      %111 = memref.load %arg2[%c5] : memref<98xf32, #tpu.memory_space<smem>>
      %c54 = arith.constant 54 : index
      %112 = memref.load %arg2[%c54] : memref<98xf32, #tpu.memory_space<smem>>
      %c254_i32 = arith.constant 254 : i32
      %113 = tpu.dynamic_rotate %51 by %c254_i32 dim 1 : vector<2x256xf32>, i32 -> vector<2x256xf32>
      %c254_i32_44 = arith.constant 254 : i32
      %114 = tpu.dynamic_rotate %54 by %c254_i32_44 dim 1 : vector<2x256xf32>, i32 -> vector<2x256xf32>
      %115 = vector.broadcast %111 : f32 to vector<2x256xf32>
      %116 = arith.mulf %115, %113 : vector<2x256xf32>
      %117 = vector.broadcast %112 : f32 to vector<2x256xf32>
      %118 = arith.mulf %117, %114 : vector<2x256xf32>
      %119 = arith.addf %116, %118 : vector<2x256xf32>
      %cst_45 = arith.constant 0.000000e+00 : f32
      %120 = vector.broadcast %cst_45 : f32 to vector<2x256xf32>
      %121 = arith.select %40, %119, %120 : vector<2x256xi1>, vector<2x256xf32>
      %122 = arith.addf %110, %121 : vector<2x256xf32>
      %c6 = arith.constant 6 : index
      %123 = memref.load %arg2[%c6] : memref<98xf32, #tpu.memory_space<smem>>
      %c55 = arith.constant 55 : index
      %124 = memref.load %arg2[%c55] : memref<98xf32, #tpu.memory_space<smem>>
      %c253_i32 = arith.constant 253 : i32
      %125 = tpu.dynamic_rotate %51 by %c253_i32 dim 1 : vector<2x256xf32>, i32 -> vector<2x256xf32>
      %c253_i32_46 = arith.constant 253 : i32
      %126 = tpu.dynamic_rotate %54 by %c253_i32_46 dim 1 : vector<2x256xf32>, i32 -> vector<2x256xf32>
      %127 = vector.broadcast %123 : f32 to vector<2x256xf32>
      %128 = arith.mulf %127, %125 : vector<2x256xf32>
      %129 = vector.broadcast %124 : f32 to vector<2x256xf32>
      %130 = arith.mulf %129, %126 : vector<2x256xf32>
      %131 = arith.addf %128, %130 : vector<2x256xf32>
      %cst_47 = arith.constant 0.000000e+00 : f32
      %132 = vector.broadcast %cst_47 : f32 to vector<2x256xf32>
      %133 = arith.select %42, %131, %132 : vector<2x256xi1>, vector<2x256xf32>
      %134 = arith.addf %122, %133 : vector<2x256xf32>
      %cst_48 = arith.constant 2.000000e+00 : f32
      %135 = vector.broadcast %cst_48 : f32 to vector<2x256xf32>
      %136 = arith.cmpf oge, %27, %135 : vector<2x256xf32>
      %cst_49 = arith.constant 1.800000e+01 : f32
      %137 = vector.broadcast %cst_49 : f32 to vector<2x256xf32>
      %138 = arith.cmpf olt, %27, %137 : vector<2x256xf32>
      %139 = arith.andi %136, %138 : vector<2x256xi1>
      %c32_i32 = arith.constant 32 : i32
      %140 = tpu.dynamic_rotate %19 by %c32_i32 dim 1 : vector<2x256xf32>, i32 -> vector<2x256xf32>
      %cst_50 = arith.constant 0.000000e+00 : f32
      %141 = vector.broadcast %cst_50 : f32 to vector<2x256xf32>
      %142 = arith.select %139, %140, %141 : vector<2x256xi1>, vector<2x256xf32>
      %c32_i32_51 = arith.constant 32 : i32
      %143 = tpu.dynamic_rotate %20 by %c32_i32_51 dim 1 : vector<2x256xf32>, i32 -> vector<2x256xf32>
      %cst_52 = arith.constant 0.000000e+00 : f32
      %144 = vector.broadcast %cst_52 : f32 to vector<2x256xf32>
      %145 = arith.select %139, %143, %144 : vector<2x256xi1>, vector<2x256xf32>
      %c7 = arith.constant 7 : index
      %146 = memref.load %arg2[%c7] : memref<98xf32, #tpu.memory_space<smem>>
      %c56 = arith.constant 56 : index
      %147 = memref.load %arg2[%c56] : memref<98xf32, #tpu.memory_space<smem>>
      %c3_i32_53 = arith.constant 3 : i32
      %148 = tpu.dynamic_rotate %142 by %c3_i32_53 dim 1 : vector<2x256xf32>, i32 -> vector<2x256xf32>
      %c3_i32_54 = arith.constant 3 : i32
      %149 = tpu.dynamic_rotate %145 by %c3_i32_54 dim 1 : vector<2x256xf32>, i32 -> vector<2x256xf32>
      %150 = vector.broadcast %146 : f32 to vector<2x256xf32>
      %151 = arith.mulf %150, %148 : vector<2x256xf32>
      %152 = vector.broadcast %147 : f32 to vector<2x256xf32>
      %153 = arith.mulf %152, %149 : vector<2x256xf32>
      %154 = arith.addf %151, %153 : vector<2x256xf32>
      %cst_55 = arith.constant 0.000000e+00 : f32
      %155 = vector.broadcast %cst_55 : f32 to vector<2x256xf32>
      %156 = arith.select %32, %154, %155 : vector<2x256xi1>, vector<2x256xf32>
      %157 = arith.addf %134, %156 : vector<2x256xf32>
      %c8 = arith.constant 8 : index
      %158 = memref.load %arg2[%c8] : memref<98xf32, #tpu.memory_space<smem>>
      %c57 = arith.constant 57 : index
      %159 = memref.load %arg2[%c57] : memref<98xf32, #tpu.memory_space<smem>>
      %c2_i32_56 = arith.constant 2 : i32
      %160 = tpu.dynamic_rotate %142 by %c2_i32_56 dim 1 : vector<2x256xf32>, i32 -> vector<2x256xf32>
      %c2_i32_57 = arith.constant 2 : i32
      %161 = tpu.dynamic_rotate %145 by %c2_i32_57 dim 1 : vector<2x256xf32>, i32 -> vector<2x256xf32>
      %162 = vector.broadcast %158 : f32 to vector<2x256xf32>
      %163 = arith.mulf %162, %160 : vector<2x256xf32>
      %164 = vector.broadcast %159 : f32 to vector<2x256xf32>
      %165 = arith.mulf %164, %161 : vector<2x256xf32>
      %166 = arith.addf %163, %165 : vector<2x256xf32>
      %cst_58 = arith.constant 0.000000e+00 : f32
      %167 = vector.broadcast %cst_58 : f32 to vector<2x256xf32>
      %168 = arith.select %34, %166, %167 : vector<2x256xi1>, vector<2x256xf32>
      %169 = arith.addf %157, %168 : vector<2x256xf32>
      %c9 = arith.constant 9 : index
      %170 = memref.load %arg2[%c9] : memref<98xf32, #tpu.memory_space<smem>>
      %c58 = arith.constant 58 : index
      %171 = memref.load %arg2[%c58] : memref<98xf32, #tpu.memory_space<smem>>
      %c1_i32_59 = arith.constant 1 : i32
      %172 = tpu.dynamic_rotate %142 by %c1_i32_59 dim 1 : vector<2x256xf32>, i32 -> vector<2x256xf32>
      %c1_i32_60 = arith.constant 1 : i32
      %173 = tpu.dynamic_rotate %145 by %c1_i32_60 dim 1 : vector<2x256xf32>, i32 -> vector<2x256xf32>
      %174 = vector.broadcast %170 : f32 to vector<2x256xf32>
      %175 = arith.mulf %174, %172 : vector<2x256xf32>
      %176 = vector.broadcast %171 : f32 to vector<2x256xf32>
      %177 = arith.mulf %176, %173 : vector<2x256xf32>
      %178 = arith.addf %175, %177 : vector<2x256xf32>
      %cst_61 = arith.constant 0.000000e+00 : f32
      %179 = vector.broadcast %cst_61 : f32 to vector<2x256xf32>
      %180 = arith.select %36, %178, %179 : vector<2x256xi1>, vector<2x256xf32>
      %181 = arith.addf %169, %180 : vector<2x256xf32>
      %c10 = arith.constant 10 : index
      %182 = memref.load %arg2[%c10] : memref<98xf32, #tpu.memory_space<smem>>
      %c59 = arith.constant 59 : index
      %183 = memref.load %arg2[%c59] : memref<98xf32, #tpu.memory_space<smem>>
      %184 = vector.broadcast %182 : f32 to vector<2x256xf32>
      %185 = arith.mulf %184, %142 : vector<2x256xf32>
      %186 = vector.broadcast %183 : f32 to vector<2x256xf32>
      %187 = arith.mulf %186, %145 : vector<2x256xf32>
      %188 = arith.addf %185, %187 : vector<2x256xf32>
      %189 = arith.addf %181, %188 : vector<2x256xf32>
      %c11 = arith.constant 11 : index
      %190 = memref.load %arg2[%c11] : memref<98xf32, #tpu.memory_space<smem>>
      %c60 = arith.constant 60 : index
      %191 = memref.load %arg2[%c60] : memref<98xf32, #tpu.memory_space<smem>>
      %c255_i32_62 = arith.constant 255 : i32
      %192 = tpu.dynamic_rotate %142 by %c255_i32_62 dim 1 : vector<2x256xf32>, i32 -> vector<2x256xf32>
      %c255_i32_63 = arith.constant 255 : i32
      %193 = tpu.dynamic_rotate %145 by %c255_i32_63 dim 1 : vector<2x256xf32>, i32 -> vector<2x256xf32>
      %194 = vector.broadcast %190 : f32 to vector<2x256xf32>
      %195 = arith.mulf %194, %192 : vector<2x256xf32>
      %196 = vector.broadcast %191 : f32 to vector<2x256xf32>
      %197 = arith.mulf %196, %193 : vector<2x256xf32>
      %198 = arith.addf %195, %197 : vector<2x256xf32>
      %cst_64 = arith.constant 0.000000e+00 : f32
      %199 = vector.broadcast %cst_64 : f32 to vector<2x256xf32>
      %200 = arith.select %38, %198, %199 : vector<2x256xi1>, vector<2x256xf32>
      %201 = arith.addf %189, %200 : vector<2x256xf32>
      %c12 = arith.constant 12 : index
      %202 = memref.load %arg2[%c12] : memref<98xf32, #tpu.memory_space<smem>>
      %c61 = arith.constant 61 : index
      %203 = memref.load %arg2[%c61] : memref<98xf32, #tpu.memory_space<smem>>
      %c254_i32_65 = arith.constant 254 : i32
      %204 = tpu.dynamic_rotate %142 by %c254_i32_65 dim 1 : vector<2x256xf32>, i32 -> vector<2x256xf32>
      %c254_i32_66 = arith.constant 254 : i32
      %205 = tpu.dynamic_rotate %145 by %c254_i32_66 dim 1 : vector<2x256xf32>, i32 -> vector<2x256xf32>
      %206 = vector.broadcast %202 : f32 to vector<2x256xf32>
      %207 = arith.mulf %206, %204 : vector<2x256xf32>
      %208 = vector.broadcast %203 : f32 to vector<2x256xf32>
      %209 = arith.mulf %208, %205 : vector<2x256xf32>
      %210 = arith.addf %207, %209 : vector<2x256xf32>
      %cst_67 = arith.constant 0.000000e+00 : f32
      %211 = vector.broadcast %cst_67 : f32 to vector<2x256xf32>
      %212 = arith.select %40, %210, %211 : vector<2x256xi1>, vector<2x256xf32>
      %213 = arith.addf %201, %212 : vector<2x256xf32>
      %c13 = arith.constant 13 : index
      %214 = memref.load %arg2[%c13] : memref<98xf32, #tpu.memory_space<smem>>
      %c62 = arith.constant 62 : index
      %215 = memref.load %arg2[%c62] : memref<98xf32, #tpu.memory_space<smem>>
      %c253_i32_68 = arith.constant 253 : i32
      %216 = tpu.dynamic_rotate %142 by %c253_i32_68 dim 1 : vector<2x256xf32>, i32 -> vector<2x256xf32>
      %c253_i32_69 = arith.constant 253 : i32
      %217 = tpu.dynamic_rotate %145 by %c253_i32_69 dim 1 : vector<2x256xf32>, i32 -> vector<2x256xf32>
      %218 = vector.broadcast %214 : f32 to vector<2x256xf32>
      %219 = arith.mulf %218, %216 : vector<2x256xf32>
      %220 = vector.broadcast %215 : f32 to vector<2x256xf32>
      %221 = arith.mulf %220, %217 : vector<2x256xf32>
      %222 = arith.addf %219, %221 : vector<2x256xf32>
      %cst_70 = arith.constant 0.000000e+00 : f32
      %223 = vector.broadcast %cst_70 : f32 to vector<2x256xf32>
      %224 = arith.select %42, %222, %223 : vector<2x256xi1>, vector<2x256xf32>
      %225 = arith.addf %213, %224 : vector<2x256xf32>
      %cst_71 = arith.constant 1.000000e+00 : f32
      %226 = vector.broadcast %cst_71 : f32 to vector<2x256xf32>
      %227 = arith.cmpf oge, %27, %226 : vector<2x256xf32>
      %cst_72 = arith.constant 1.700000e+01 : f32
      %228 = vector.broadcast %cst_72 : f32 to vector<2x256xf32>
      %229 = arith.cmpf olt, %27, %228 : vector<2x256xf32>
      %230 = arith.andi %227, %229 : vector<2x256xi1>
      %c16_i32 = arith.constant 16 : i32
      %231 = tpu.dynamic_rotate %19 by %c16_i32 dim 1 : vector<2x256xf32>, i32 -> vector<2x256xf32>
      %cst_73 = arith.constant 0.000000e+00 : f32
      %232 = vector.broadcast %cst_73 : f32 to vector<2x256xf32>
      %233 = arith.select %230, %231, %232 : vector<2x256xi1>, vector<2x256xf32>
      %c16_i32_74 = arith.constant 16 : i32
      %234 = tpu.dynamic_rotate %20 by %c16_i32_74 dim 1 : vector<2x256xf32>, i32 -> vector<2x256xf32>
      %cst_75 = arith.constant 0.000000e+00 : f32
      %235 = vector.broadcast %cst_75 : f32 to vector<2x256xf32>
      %236 = arith.select %230, %234, %235 : vector<2x256xi1>, vector<2x256xf32>
      %c14 = arith.constant 14 : index
      %237 = memref.load %arg2[%c14] : memref<98xf32, #tpu.memory_space<smem>>
      %c63 = arith.constant 63 : index
      %238 = memref.load %arg2[%c63] : memref<98xf32, #tpu.memory_space<smem>>
      %c3_i32_76 = arith.constant 3 : i32
      %239 = tpu.dynamic_rotate %233 by %c3_i32_76 dim 1 : vector<2x256xf32>, i32 -> vector<2x256xf32>
      %c3_i32_77 = arith.constant 3 : i32
      %240 = tpu.dynamic_rotate %236 by %c3_i32_77 dim 1 : vector<2x256xf32>, i32 -> vector<2x256xf32>
      %241 = vector.broadcast %237 : f32 to vector<2x256xf32>
      %242 = arith.mulf %241, %239 : vector<2x256xf32>
      %243 = vector.broadcast %238 : f32 to vector<2x256xf32>
      %244 = arith.mulf %243, %240 : vector<2x256xf32>
      %245 = arith.addf %242, %244 : vector<2x256xf32>
      %cst_78 = arith.constant 0.000000e+00 : f32
      %246 = vector.broadcast %cst_78 : f32 to vector<2x256xf32>
      %247 = arith.select %32, %245, %246 : vector<2x256xi1>, vector<2x256xf32>
      %248 = arith.addf %225, %247 : vector<2x256xf32>
      %c15 = arith.constant 15 : index
      %249 = memref.load %arg2[%c15] : memref<98xf32, #tpu.memory_space<smem>>
      %c64 = arith.constant 64 : index
      %250 = memref.load %arg2[%c64] : memref<98xf32, #tpu.memory_space<smem>>
      %c2_i32_79 = arith.constant 2 : i32
      %251 = tpu.dynamic_rotate %233 by %c2_i32_79 dim 1 : vector<2x256xf32>, i32 -> vector<2x256xf32>
      %c2_i32_80 = arith.constant 2 : i32
      %252 = tpu.dynamic_rotate %236 by %c2_i32_80 dim 1 : vector<2x256xf32>, i32 -> vector<2x256xf32>
      %253 = vector.broadcast %249 : f32 to vector<2x256xf32>
      %254 = arith.mulf %253, %251 : vector<2x256xf32>
      %255 = vector.broadcast %250 : f32 to vector<2x256xf32>
      %256 = arith.mulf %255, %252 : vector<2x256xf32>
      %257 = arith.addf %254, %256 : vector<2x256xf32>
      %cst_81 = arith.constant 0.000000e+00 : f32
      %258 = vector.broadcast %cst_81 : f32 to vector<2x256xf32>
      %259 = arith.select %34, %257, %258 : vector<2x256xi1>, vector<2x256xf32>
      %260 = arith.addf %248, %259 : vector<2x256xf32>
      %c16 = arith.constant 16 : index
      %261 = memref.load %arg2[%c16] : memref<98xf32, #tpu.memory_space<smem>>
      %c65 = arith.constant 65 : index
      %262 = memref.load %arg2[%c65] : memref<98xf32, #tpu.memory_space<smem>>
      %c1_i32_82 = arith.constant 1 : i32
      %263 = tpu.dynamic_rotate %233 by %c1_i32_82 dim 1 : vector<2x256xf32>, i32 -> vector<2x256xf32>
      %c1_i32_83 = arith.constant 1 : i32
      %264 = tpu.dynamic_rotate %236 by %c1_i32_83 dim 1 : vector<2x256xf32>, i32 -> vector<2x256xf32>
      %265 = vector.broadcast %261 : f32 to vector<2x256xf32>
      %266 = arith.mulf %265, %263 : vector<2x256xf32>
      %267 = vector.broadcast %262 : f32 to vector<2x256xf32>
      %268 = arith.mulf %267, %264 : vector<2x256xf32>
      %269 = arith.addf %266, %268 : vector<2x256xf32>
      %cst_84 = arith.constant 0.000000e+00 : f32
      %270 = vector.broadcast %cst_84 : f32 to vector<2x256xf32>
      %271 = arith.select %36, %269, %270 : vector<2x256xi1>, vector<2x256xf32>
      %272 = arith.addf %260, %271 : vector<2x256xf32>
      %c17 = arith.constant 17 : index
      %273 = memref.load %arg2[%c17] : memref<98xf32, #tpu.memory_space<smem>>
      %c66 = arith.constant 66 : index
      %274 = memref.load %arg2[%c66] : memref<98xf32, #tpu.memory_space<smem>>
      %275 = vector.broadcast %273 : f32 to vector<2x256xf32>
      %276 = arith.mulf %275, %233 : vector<2x256xf32>
      %277 = vector.broadcast %274 : f32 to vector<2x256xf32>
      %278 = arith.mulf %277, %236 : vector<2x256xf32>
      %279 = arith.addf %276, %278 : vector<2x256xf32>
      %280 = arith.addf %272, %279 : vector<2x256xf32>
      %c18 = arith.constant 18 : index
      %281 = memref.load %arg2[%c18] : memref<98xf32, #tpu.memory_space<smem>>
      %c67 = arith.constant 67 : index
      %282 = memref.load %arg2[%c67] : memref<98xf32, #tpu.memory_space<smem>>
      %c255_i32_85 = arith.constant 255 : i32
      %283 = tpu.dynamic_rotate %233 by %c255_i32_85 dim 1 : vector<2x256xf32>, i32 -> vector<2x256xf32>
      %c255_i32_86 = arith.constant 255 : i32
      %284 = tpu.dynamic_rotate %236 by %c255_i32_86 dim 1 : vector<2x256xf32>, i32 -> vector<2x256xf32>
      %285 = vector.broadcast %281 : f32 to vector<2x256xf32>
      %286 = arith.mulf %285, %283 : vector<2x256xf32>
      %287 = vector.broadcast %282 : f32 to vector<2x256xf32>
      %288 = arith.mulf %287, %284 : vector<2x256xf32>
      %289 = arith.addf %286, %288 : vector<2x256xf32>
      %cst_87 = arith.constant 0.000000e+00 : f32
      %290 = vector.broadcast %cst_87 : f32 to vector<2x256xf32>
      %291 = arith.select %38, %289, %290 : vector<2x256xi1>, vector<2x256xf32>
      %292 = arith.addf %280, %291 : vector<2x256xf32>
      %c19 = arith.constant 19 : index
      %293 = memref.load %arg2[%c19] : memref<98xf32, #tpu.memory_space<smem>>
      %c68 = arith.constant 68 : index
      %294 = memref.load %arg2[%c68] : memref<98xf32, #tpu.memory_space<smem>>
      %c254_i32_88 = arith.constant 254 : i32
      %295 = tpu.dynamic_rotate %233 by %c254_i32_88 dim 1 : vector<2x256xf32>, i32 -> vector<2x256xf32>
      %c254_i32_89 = arith.constant 254 : i32
      %296 = tpu.dynamic_rotate %236 by %c254_i32_89 dim 1 : vector<2x256xf32>, i32 -> vector<2x256xf32>
      %297 = vector.broadcast %293 : f32 to vector<2x256xf32>
      %298 = arith.mulf %297, %295 : vector<2x256xf32>
      %299 = vector.broadcast %294 : f32 to vector<2x256xf32>
      %300 = arith.mulf %299, %296 : vector<2x256xf32>
      %301 = arith.addf %298, %300 : vector<2x256xf32>
      %cst_90 = arith.constant 0.000000e+00 : f32
      %302 = vector.broadcast %cst_90 : f32 to vector<2x256xf32>
      %303 = arith.select %40, %301, %302 : vector<2x256xi1>, vector<2x256xf32>
      %304 = arith.addf %292, %303 : vector<2x256xf32>
      %c20 = arith.constant 20 : index
      %305 = memref.load %arg2[%c20] : memref<98xf32, #tpu.memory_space<smem>>
      %c69 = arith.constant 69 : index
      %306 = memref.load %arg2[%c69] : memref<98xf32, #tpu.memory_space<smem>>
      %c253_i32_91 = arith.constant 253 : i32
      %307 = tpu.dynamic_rotate %233 by %c253_i32_91 dim 1 : vector<2x256xf32>, i32 -> vector<2x256xf32>
      %c253_i32_92 = arith.constant 253 : i32
      %308 = tpu.dynamic_rotate %236 by %c253_i32_92 dim 1 : vector<2x256xf32>, i32 -> vector<2x256xf32>
      %309 = vector.broadcast %305 : f32 to vector<2x256xf32>
      %310 = arith.mulf %309, %307 : vector<2x256xf32>
      %311 = vector.broadcast %306 : f32 to vector<2x256xf32>
      %312 = arith.mulf %311, %308 : vector<2x256xf32>
      %313 = arith.addf %310, %312 : vector<2x256xf32>
      %cst_93 = arith.constant 0.000000e+00 : f32
      %314 = vector.broadcast %cst_93 : f32 to vector<2x256xf32>
      %315 = arith.select %42, %313, %314 : vector<2x256xi1>, vector<2x256xf32>
      %316 = arith.addf %304, %315 : vector<2x256xf32>
      %c21 = arith.constant 21 : index
      %317 = memref.load %arg2[%c21] : memref<98xf32, #tpu.memory_space<smem>>
      %c70 = arith.constant 70 : index
      %318 = memref.load %arg2[%c70] : memref<98xf32, #tpu.memory_space<smem>>
      %c3_i32_94 = arith.constant 3 : i32
      %319 = tpu.dynamic_rotate %19 by %c3_i32_94 dim 1 : vector<2x256xf32>, i32 -> vector<2x256xf32>
      %c3_i32_95 = arith.constant 3 : i32
      %320 = tpu.dynamic_rotate %20 by %c3_i32_95 dim 1 : vector<2x256xf32>, i32 -> vector<2x256xf32>
      %321 = vector.broadcast %317 : f32 to vector<2x256xf32>
      %322 = arith.mulf %321, %319 : vector<2x256xf32>
      %323 = vector.broadcast %318 : f32 to vector<2x256xf32>
      %324 = arith.mulf %323, %320 : vector<2x256xf32>
      %325 = arith.addf %322, %324 : vector<2x256xf32>
      %cst_96 = arith.constant 0.000000e+00 : f32
      %326 = vector.broadcast %cst_96 : f32 to vector<2x256xf32>
      %327 = arith.select %32, %325, %326 : vector<2x256xi1>, vector<2x256xf32>
      %328 = arith.addf %316, %327 : vector<2x256xf32>
      %c22 = arith.constant 22 : index
      %329 = memref.load %arg2[%c22] : memref<98xf32, #tpu.memory_space<smem>>
      %c71 = arith.constant 71 : index
      %330 = memref.load %arg2[%c71] : memref<98xf32, #tpu.memory_space<smem>>
      %c2_i32_97 = arith.constant 2 : i32
      %331 = tpu.dynamic_rotate %19 by %c2_i32_97 dim 1 : vector<2x256xf32>, i32 -> vector<2x256xf32>
      %c2_i32_98 = arith.constant 2 : i32
      %332 = tpu.dynamic_rotate %20 by %c2_i32_98 dim 1 : vector<2x256xf32>, i32 -> vector<2x256xf32>
      %333 = vector.broadcast %329 : f32 to vector<2x256xf32>
      %334 = arith.mulf %333, %331 : vector<2x256xf32>
      %335 = vector.broadcast %330 : f32 to vector<2x256xf32>
      %336 = arith.mulf %335, %332 : vector<2x256xf32>
      %337 = arith.addf %334, %336 : vector<2x256xf32>
      %cst_99 = arith.constant 0.000000e+00 : f32
      %338 = vector.broadcast %cst_99 : f32 to vector<2x256xf32>
      %339 = arith.select %34, %337, %338 : vector<2x256xi1>, vector<2x256xf32>
      %340 = arith.addf %328, %339 : vector<2x256xf32>
      %c23 = arith.constant 23 : index
      %341 = memref.load %arg2[%c23] : memref<98xf32, #tpu.memory_space<smem>>
      %c72 = arith.constant 72 : index
      %342 = memref.load %arg2[%c72] : memref<98xf32, #tpu.memory_space<smem>>
      %c1_i32_100 = arith.constant 1 : i32
      %343 = tpu.dynamic_rotate %19 by %c1_i32_100 dim 1 : vector<2x256xf32>, i32 -> vector<2x256xf32>
      %c1_i32_101 = arith.constant 1 : i32
      %344 = tpu.dynamic_rotate %20 by %c1_i32_101 dim 1 : vector<2x256xf32>, i32 -> vector<2x256xf32>
      %345 = vector.broadcast %341 : f32 to vector<2x256xf32>
      %346 = arith.mulf %345, %343 : vector<2x256xf32>
      %347 = vector.broadcast %342 : f32 to vector<2x256xf32>
      %348 = arith.mulf %347, %344 : vector<2x256xf32>
      %349 = arith.addf %346, %348 : vector<2x256xf32>
      %cst_102 = arith.constant 0.000000e+00 : f32
      %350 = vector.broadcast %cst_102 : f32 to vector<2x256xf32>
      %351 = arith.select %36, %349, %350 : vector<2x256xi1>, vector<2x256xf32>
      %352 = arith.addf %340, %351 : vector<2x256xf32>
      %c24 = arith.constant 24 : index
      %353 = memref.load %arg2[%c24] : memref<98xf32, #tpu.memory_space<smem>>
      %c73 = arith.constant 73 : index
      %354 = memref.load %arg2[%c73] : memref<98xf32, #tpu.memory_space<smem>>
      %355 = vector.broadcast %353 : f32 to vector<2x256xf32>
      %356 = arith.mulf %355, %19 : vector<2x256xf32>
      %357 = vector.broadcast %354 : f32 to vector<2x256xf32>
      %358 = arith.mulf %357, %20 : vector<2x256xf32>
      %359 = arith.addf %356, %358 : vector<2x256xf32>
      %360 = arith.addf %352, %359 : vector<2x256xf32>
      %c25 = arith.constant 25 : index
      %361 = memref.load %arg2[%c25] : memref<98xf32, #tpu.memory_space<smem>>
      %c74 = arith.constant 74 : index
      %362 = memref.load %arg2[%c74] : memref<98xf32, #tpu.memory_space<smem>>
      %c255_i32_103 = arith.constant 255 : i32
      %363 = tpu.dynamic_rotate %19 by %c255_i32_103 dim 1 : vector<2x256xf32>, i32 -> vector<2x256xf32>
      %c255_i32_104 = arith.constant 255 : i32
      %364 = tpu.dynamic_rotate %20 by %c255_i32_104 dim 1 : vector<2x256xf32>, i32 -> vector<2x256xf32>
      %365 = vector.broadcast %361 : f32 to vector<2x256xf32>
      %366 = arith.mulf %365, %363 : vector<2x256xf32>
      %367 = vector.broadcast %362 : f32 to vector<2x256xf32>
      %368 = arith.mulf %367, %364 : vector<2x256xf32>
      %369 = arith.addf %366, %368 : vector<2x256xf32>
      %cst_105 = arith.constant 0.000000e+00 : f32
      %370 = vector.broadcast %cst_105 : f32 to vector<2x256xf32>
      %371 = arith.select %38, %369, %370 : vector<2x256xi1>, vector<2x256xf32>
      %372 = arith.addf %360, %371 : vector<2x256xf32>
      %c26 = arith.constant 26 : index
      %373 = memref.load %arg2[%c26] : memref<98xf32, #tpu.memory_space<smem>>
      %c75 = arith.constant 75 : index
      %374 = memref.load %arg2[%c75] : memref<98xf32, #tpu.memory_space<smem>>
      %c254_i32_106 = arith.constant 254 : i32
      %375 = tpu.dynamic_rotate %19 by %c254_i32_106 dim 1 : vector<2x256xf32>, i32 -> vector<2x256xf32>
      %c254_i32_107 = arith.constant 254 : i32
      %376 = tpu.dynamic_rotate %20 by %c254_i32_107 dim 1 : vector<2x256xf32>, i32 -> vector<2x256xf32>
      %377 = vector.broadcast %373 : f32 to vector<2x256xf32>
      %378 = arith.mulf %377, %375 : vector<2x256xf32>
      %379 = vector.broadcast %374 : f32 to vector<2x256xf32>
      %380 = arith.mulf %379, %376 : vector<2x256xf32>
      %381 = arith.addf %378, %380 : vector<2x256xf32>
      %cst_108 = arith.constant 0.000000e+00 : f32
      %382 = vector.broadcast %cst_108 : f32 to vector<2x256xf32>
      %383 = arith.select %40, %381, %382 : vector<2x256xi1>, vector<2x256xf32>
      %384 = arith.addf %372, %383 : vector<2x256xf32>
      %c27 = arith.constant 27 : index
      %385 = memref.load %arg2[%c27] : memref<98xf32, #tpu.memory_space<smem>>
      %c76 = arith.constant 76 : index
      %386 = memref.load %arg2[%c76] : memref<98xf32, #tpu.memory_space<smem>>
      %c253_i32_109 = arith.constant 253 : i32
      %387 = tpu.dynamic_rotate %19 by %c253_i32_109 dim 1 : vector<2x256xf32>, i32 -> vector<2x256xf32>
      %c253_i32_110 = arith.constant 253 : i32
      %388 = tpu.dynamic_rotate %20 by %c253_i32_110 dim 1 : vector<2x256xf32>, i32 -> vector<2x256xf32>
      %389 = vector.broadcast %385 : f32 to vector<2x256xf32>
      %390 = arith.mulf %389, %387 : vector<2x256xf32>
      %391 = vector.broadcast %386 : f32 to vector<2x256xf32>
      %392 = arith.mulf %391, %388 : vector<2x256xf32>
      %393 = arith.addf %390, %392 : vector<2x256xf32>
      %cst_111 = arith.constant 0.000000e+00 : f32
      %394 = vector.broadcast %cst_111 : f32 to vector<2x256xf32>
      %395 = arith.select %42, %393, %394 : vector<2x256xi1>, vector<2x256xf32>
      %396 = arith.addf %384, %395 : vector<2x256xf32>
      %cst_112 = arith.constant -1.000000e+00 : f32
      %397 = vector.broadcast %cst_112 : f32 to vector<2x256xf32>
      %398 = arith.cmpf oge, %27, %397 : vector<2x256xf32>
      %cst_113 = arith.constant 1.500000e+01 : f32
      %399 = vector.broadcast %cst_113 : f32 to vector<2x256xf32>
      %400 = arith.cmpf olt, %27, %399 : vector<2x256xf32>
      %401 = arith.andi %398, %400 : vector<2x256xi1>
      %c240_i32 = arith.constant 240 : i32
      %402 = tpu.dynamic_rotate %19 by %c240_i32 dim 1 : vector<2x256xf32>, i32 -> vector<2x256xf32>
      %cst_114 = arith.constant 0.000000e+00 : f32
      %403 = vector.broadcast %cst_114 : f32 to vector<2x256xf32>
      %404 = arith.select %401, %402, %403 : vector<2x256xi1>, vector<2x256xf32>
      %c240_i32_115 = arith.constant 240 : i32
      %405 = tpu.dynamic_rotate %20 by %c240_i32_115 dim 1 : vector<2x256xf32>, i32 -> vector<2x256xf32>
      %cst_116 = arith.constant 0.000000e+00 : f32
      %406 = vector.broadcast %cst_116 : f32 to vector<2x256xf32>
      %407 = arith.select %401, %405, %406 : vector<2x256xi1>, vector<2x256xf32>
      %c28 = arith.constant 28 : index
      %408 = memref.load %arg2[%c28] : memref<98xf32, #tpu.memory_space<smem>>
      %c77 = arith.constant 77 : index
      %409 = memref.load %arg2[%c77] : memref<98xf32, #tpu.memory_space<smem>>
      %c3_i32_117 = arith.constant 3 : i32
      %410 = tpu.dynamic_rotate %404 by %c3_i32_117 dim 1 : vector<2x256xf32>, i32 -> vector<2x256xf32>
      %c3_i32_118 = arith.constant 3 : i32
      %411 = tpu.dynamic_rotate %407 by %c3_i32_118 dim 1 : vector<2x256xf32>, i32 -> vector<2x256xf32>
      %412 = vector.broadcast %408 : f32 to vector<2x256xf32>
      %413 = arith.mulf %412, %410 : vector<2x256xf32>
      %414 = vector.broadcast %409 : f32 to vector<2x256xf32>
      %415 = arith.mulf %414, %411 : vector<2x256xf32>
      %416 = arith.addf %413, %415 : vector<2x256xf32>
      %cst_119 = arith.constant 0.000000e+00 : f32
      %417 = vector.broadcast %cst_119 : f32 to vector<2x256xf32>
      %418 = arith.select %32, %416, %417 : vector<2x256xi1>, vector<2x256xf32>
      %419 = arith.addf %396, %418 : vector<2x256xf32>
      %c29 = arith.constant 29 : index
      %420 = memref.load %arg2[%c29] : memref<98xf32, #tpu.memory_space<smem>>
      %c78 = arith.constant 78 : index
      %421 = memref.load %arg2[%c78] : memref<98xf32, #tpu.memory_space<smem>>
      %c2_i32_120 = arith.constant 2 : i32
      %422 = tpu.dynamic_rotate %404 by %c2_i32_120 dim 1 : vector<2x256xf32>, i32 -> vector<2x256xf32>
      %c2_i32_121 = arith.constant 2 : i32
      %423 = tpu.dynamic_rotate %407 by %c2_i32_121 dim 1 : vector<2x256xf32>, i32 -> vector<2x256xf32>
      %424 = vector.broadcast %420 : f32 to vector<2x256xf32>
      %425 = arith.mulf %424, %422 : vector<2x256xf32>
      %426 = vector.broadcast %421 : f32 to vector<2x256xf32>
      %427 = arith.mulf %426, %423 : vector<2x256xf32>
      %428 = arith.addf %425, %427 : vector<2x256xf32>
      %cst_122 = arith.constant 0.000000e+00 : f32
      %429 = vector.broadcast %cst_122 : f32 to vector<2x256xf32>
      %430 = arith.select %34, %428, %429 : vector<2x256xi1>, vector<2x256xf32>
      %431 = arith.addf %419, %430 : vector<2x256xf32>
      %c30 = arith.constant 30 : index
      %432 = memref.load %arg2[%c30] : memref<98xf32, #tpu.memory_space<smem>>
      %c79 = arith.constant 79 : index
      %433 = memref.load %arg2[%c79] : memref<98xf32, #tpu.memory_space<smem>>
      %c1_i32_123 = arith.constant 1 : i32
      %434 = tpu.dynamic_rotate %404 by %c1_i32_123 dim 1 : vector<2x256xf32>, i32 -> vector<2x256xf32>
      %c1_i32_124 = arith.constant 1 : i32
      %435 = tpu.dynamic_rotate %407 by %c1_i32_124 dim 1 : vector<2x256xf32>, i32 -> vector<2x256xf32>
      %436 = vector.broadcast %432 : f32 to vector<2x256xf32>
      %437 = arith.mulf %436, %434 : vector<2x256xf32>
      %438 = vector.broadcast %433 : f32 to vector<2x256xf32>
      %439 = arith.mulf %438, %435 : vector<2x256xf32>
      %440 = arith.addf %437, %439 : vector<2x256xf32>
      %cst_125 = arith.constant 0.000000e+00 : f32
      %441 = vector.broadcast %cst_125 : f32 to vector<2x256xf32>
      %442 = arith.select %36, %440, %441 : vector<2x256xi1>, vector<2x256xf32>
      %443 = arith.addf %431, %442 : vector<2x256xf32>
      %c31 = arith.constant 31 : index
      %444 = memref.load %arg2[%c31] : memref<98xf32, #tpu.memory_space<smem>>
      %c80 = arith.constant 80 : index
      %445 = memref.load %arg2[%c80] : memref<98xf32, #tpu.memory_space<smem>>
      %446 = vector.broadcast %444 : f32 to vector<2x256xf32>
      %447 = arith.mulf %446, %404 : vector<2x256xf32>
      %448 = vector.broadcast %445 : f32 to vector<2x256xf32>
      %449 = arith.mulf %448, %407 : vector<2x256xf32>
      %450 = arith.addf %447, %449 : vector<2x256xf32>
      %451 = arith.addf %443, %450 : vector<2x256xf32>
      %c32 = arith.constant 32 : index
      %452 = memref.load %arg2[%c32] : memref<98xf32, #tpu.memory_space<smem>>
      %c81 = arith.constant 81 : index
      %453 = memref.load %arg2[%c81] : memref<98xf32, #tpu.memory_space<smem>>
      %c255_i32_126 = arith.constant 255 : i32
      %454 = tpu.dynamic_rotate %404 by %c255_i32_126 dim 1 : vector<2x256xf32>, i32 -> vector<2x256xf32>
      %c255_i32_127 = arith.constant 255 : i32
      %455 = tpu.dynamic_rotate %407 by %c255_i32_127 dim 1 : vector<2x256xf32>, i32 -> vector<2x256xf32>
      %456 = vector.broadcast %452 : f32 to vector<2x256xf32>
      %457 = arith.mulf %456, %454 : vector<2x256xf32>
      %458 = vector.broadcast %453 : f32 to vector<2x256xf32>
      %459 = arith.mulf %458, %455 : vector<2x256xf32>
      %460 = arith.addf %457, %459 : vector<2x256xf32>
      %cst_128 = arith.constant 0.000000e+00 : f32
      %461 = vector.broadcast %cst_128 : f32 to vector<2x256xf32>
      %462 = arith.select %38, %460, %461 : vector<2x256xi1>, vector<2x256xf32>
      %463 = arith.addf %451, %462 : vector<2x256xf32>
      %c33 = arith.constant 33 : index
      %464 = memref.load %arg2[%c33] : memref<98xf32, #tpu.memory_space<smem>>
      %c82 = arith.constant 82 : index
      %465 = memref.load %arg2[%c82] : memref<98xf32, #tpu.memory_space<smem>>
      %c254_i32_129 = arith.constant 254 : i32
      %466 = tpu.dynamic_rotate %404 by %c254_i32_129 dim 1 : vector<2x256xf32>, i32 -> vector<2x256xf32>
      %c254_i32_130 = arith.constant 254 : i32
      %467 = tpu.dynamic_rotate %407 by %c254_i32_130 dim 1 : vector<2x256xf32>, i32 -> vector<2x256xf32>
      %468 = vector.broadcast %464 : f32 to vector<2x256xf32>
      %469 = arith.mulf %468, %466 : vector<2x256xf32>
      %470 = vector.broadcast %465 : f32 to vector<2x256xf32>
      %471 = arith.mulf %470, %467 : vector<2x256xf32>
      %472 = arith.addf %469, %471 : vector<2x256xf32>
      %cst_131 = arith.constant 0.000000e+00 : f32
      %473 = vector.broadcast %cst_131 : f32 to vector<2x256xf32>
      %474 = arith.select %40, %472, %473 : vector<2x256xi1>, vector<2x256xf32>
      %475 = arith.addf %463, %474 : vector<2x256xf32>
      %c34 = arith.constant 34 : index
      %476 = memref.load %arg2[%c34] : memref<98xf32, #tpu.memory_space<smem>>
      %c83 = arith.constant 83 : index
      %477 = memref.load %arg2[%c83] : memref<98xf32, #tpu.memory_space<smem>>
      %c253_i32_132 = arith.constant 253 : i32
      %478 = tpu.dynamic_rotate %404 by %c253_i32_132 dim 1 : vector<2x256xf32>, i32 -> vector<2x256xf32>
      %c253_i32_133 = arith.constant 253 : i32
      %479 = tpu.dynamic_rotate %407 by %c253_i32_133 dim 1 : vector<2x256xf32>, i32 -> vector<2x256xf32>
      %480 = vector.broadcast %476 : f32 to vector<2x256xf32>
      %481 = arith.mulf %480, %478 : vector<2x256xf32>
      %482 = vector.broadcast %477 : f32 to vector<2x256xf32>
      %483 = arith.mulf %482, %479 : vector<2x256xf32>
      %484 = arith.addf %481, %483 : vector<2x256xf32>
      %cst_134 = arith.constant 0.000000e+00 : f32
      %485 = vector.broadcast %cst_134 : f32 to vector<2x256xf32>
      %486 = arith.select %42, %484, %485 : vector<2x256xi1>, vector<2x256xf32>
      %487 = arith.addf %475, %486 : vector<2x256xf32>
      %cst_135 = arith.constant -2.000000e+00 : f32
      %488 = vector.broadcast %cst_135 : f32 to vector<2x256xf32>
      %489 = arith.cmpf oge, %27, %488 : vector<2x256xf32>
      %cst_136 = arith.constant 1.400000e+01 : f32
      %490 = vector.broadcast %cst_136 : f32 to vector<2x256xf32>
      %491 = arith.cmpf olt, %27, %490 : vector<2x256xf32>
      %492 = arith.andi %489, %491 : vector<2x256xi1>
      %c224_i32 = arith.constant 224 : i32
      %493 = tpu.dynamic_rotate %19 by %c224_i32 dim 1 : vector<2x256xf32>, i32 -> vector<2x256xf32>
      %cst_137 = arith.constant 0.000000e+00 : f32
      %494 = vector.broadcast %cst_137 : f32 to vector<2x256xf32>
      %495 = arith.select %492, %493, %494 : vector<2x256xi1>, vector<2x256xf32>
      %c224_i32_138 = arith.constant 224 : i32
      %496 = tpu.dynamic_rotate %20 by %c224_i32_138 dim 1 : vector<2x256xf32>, i32 -> vector<2x256xf32>
      %cst_139 = arith.constant 0.000000e+00 : f32
      %497 = vector.broadcast %cst_139 : f32 to vector<2x256xf32>
      %498 = arith.select %492, %496, %497 : vector<2x256xi1>, vector<2x256xf32>
      %c35 = arith.constant 35 : index
      %499 = memref.load %arg2[%c35] : memref<98xf32, #tpu.memory_space<smem>>
      %c84 = arith.constant 84 : index
      %500 = memref.load %arg2[%c84] : memref<98xf32, #tpu.memory_space<smem>>
      %c3_i32_140 = arith.constant 3 : i32
      %501 = tpu.dynamic_rotate %495 by %c3_i32_140 dim 1 : vector<2x256xf32>, i32 -> vector<2x256xf32>
      %c3_i32_141 = arith.constant 3 : i32
      %502 = tpu.dynamic_rotate %498 by %c3_i32_141 dim 1 : vector<2x256xf32>, i32 -> vector<2x256xf32>
      %503 = vector.broadcast %499 : f32 to vector<2x256xf32>
      %504 = arith.mulf %503, %501 : vector<2x256xf32>
      %505 = vector.broadcast %500 : f32 to vector<2x256xf32>
      %506 = arith.mulf %505, %502 : vector<2x256xf32>
      %507 = arith.addf %504, %506 : vector<2x256xf32>
      %cst_142 = arith.constant 0.000000e+00 : f32
      %508 = vector.broadcast %cst_142 : f32 to vector<2x256xf32>
      %509 = arith.select %32, %507, %508 : vector<2x256xi1>, vector<2x256xf32>
      %510 = arith.addf %487, %509 : vector<2x256xf32>
      %c36 = arith.constant 36 : index
      %511 = memref.load %arg2[%c36] : memref<98xf32, #tpu.memory_space<smem>>
      %c85 = arith.constant 85 : index
      %512 = memref.load %arg2[%c85] : memref<98xf32, #tpu.memory_space<smem>>
      %c2_i32_143 = arith.constant 2 : i32
      %513 = tpu.dynamic_rotate %495 by %c2_i32_143 dim 1 : vector<2x256xf32>, i32 -> vector<2x256xf32>
      %c2_i32_144 = arith.constant 2 : i32
      %514 = tpu.dynamic_rotate %498 by %c2_i32_144 dim 1 : vector<2x256xf32>, i32 -> vector<2x256xf32>
      %515 = vector.broadcast %511 : f32 to vector<2x256xf32>
      %516 = arith.mulf %515, %513 : vector<2x256xf32>
      %517 = vector.broadcast %512 : f32 to vector<2x256xf32>
      %518 = arith.mulf %517, %514 : vector<2x256xf32>
      %519 = arith.addf %516, %518 : vector<2x256xf32>
      %cst_145 = arith.constant 0.000000e+00 : f32
      %520 = vector.broadcast %cst_145 : f32 to vector<2x256xf32>
      %521 = arith.select %34, %519, %520 : vector<2x256xi1>, vector<2x256xf32>
      %522 = arith.addf %510, %521 : vector<2x256xf32>
      %c37 = arith.constant 37 : index
      %523 = memref.load %arg2[%c37] : memref<98xf32, #tpu.memory_space<smem>>
      %c86 = arith.constant 86 : index
      %524 = memref.load %arg2[%c86] : memref<98xf32, #tpu.memory_space<smem>>
      %c1_i32_146 = arith.constant 1 : i32
      %525 = tpu.dynamic_rotate %495 by %c1_i32_146 dim 1 : vector<2x256xf32>, i32 -> vector<2x256xf32>
      %c1_i32_147 = arith.constant 1 : i32
      %526 = tpu.dynamic_rotate %498 by %c1_i32_147 dim 1 : vector<2x256xf32>, i32 -> vector<2x256xf32>
      %527 = vector.broadcast %523 : f32 to vector<2x256xf32>
      %528 = arith.mulf %527, %525 : vector<2x256xf32>
      %529 = vector.broadcast %524 : f32 to vector<2x256xf32>
      %530 = arith.mulf %529, %526 : vector<2x256xf32>
      %531 = arith.addf %528, %530 : vector<2x256xf32>
      %cst_148 = arith.constant 0.000000e+00 : f32
      %532 = vector.broadcast %cst_148 : f32 to vector<2x256xf32>
      %533 = arith.select %36, %531, %532 : vector<2x256xi1>, vector<2x256xf32>
      %534 = arith.addf %522, %533 : vector<2x256xf32>
      %c38 = arith.constant 38 : index
      %535 = memref.load %arg2[%c38] : memref<98xf32, #tpu.memory_space<smem>>
      %c87 = arith.constant 87 : index
      %536 = memref.load %arg2[%c87] : memref<98xf32, #tpu.memory_space<smem>>
      %537 = vector.broadcast %535 : f32 to vector<2x256xf32>
      %538 = arith.mulf %537, %495 : vector<2x256xf32>
      %539 = vector.broadcast %536 : f32 to vector<2x256xf32>
      %540 = arith.mulf %539, %498 : vector<2x256xf32>
      %541 = arith.addf %538, %540 : vector<2x256xf32>
      %542 = arith.addf %534, %541 : vector<2x256xf32>
      %c39 = arith.constant 39 : index
      %543 = memref.load %arg2[%c39] : memref<98xf32, #tpu.memory_space<smem>>
      %c88 = arith.constant 88 : index
      %544 = memref.load %arg2[%c88] : memref<98xf32, #tpu.memory_space<smem>>
      %c255_i32_149 = arith.constant 255 : i32
      %545 = tpu.dynamic_rotate %495 by %c255_i32_149 dim 1 : vector<2x256xf32>, i32 -> vector<2x256xf32>
      %c255_i32_150 = arith.constant 255 : i32
      %546 = tpu.dynamic_rotate %498 by %c255_i32_150 dim 1 : vector<2x256xf32>, i32 -> vector<2x256xf32>
      %547 = vector.broadcast %543 : f32 to vector<2x256xf32>
      %548 = arith.mulf %547, %545 : vector<2x256xf32>
      %549 = vector.broadcast %544 : f32 to vector<2x256xf32>
      %550 = arith.mulf %549, %546 : vector<2x256xf32>
      %551 = arith.addf %548, %550 : vector<2x256xf32>
      %cst_151 = arith.constant 0.000000e+00 : f32
      %552 = vector.broadcast %cst_151 : f32 to vector<2x256xf32>
      %553 = arith.select %38, %551, %552 : vector<2x256xi1>, vector<2x256xf32>
      %554 = arith.addf %542, %553 : vector<2x256xf32>
      %c40 = arith.constant 40 : index
      %555 = memref.load %arg2[%c40] : memref<98xf32, #tpu.memory_space<smem>>
      %c89 = arith.constant 89 : index
      %556 = memref.load %arg2[%c89] : memref<98xf32, #tpu.memory_space<smem>>
      %c254_i32_152 = arith.constant 254 : i32
      %557 = tpu.dynamic_rotate %495 by %c254_i32_152 dim 1 : vector<2x256xf32>, i32 -> vector<2x256xf32>
      %c254_i32_153 = arith.constant 254 : i32
      %558 = tpu.dynamic_rotate %498 by %c254_i32_153 dim 1 : vector<2x256xf32>, i32 -> vector<2x256xf32>
      %559 = vector.broadcast %555 : f32 to vector<2x256xf32>
      %560 = arith.mulf %559, %557 : vector<2x256xf32>
      %561 = vector.broadcast %556 : f32 to vector<2x256xf32>
      %562 = arith.mulf %561, %558 : vector<2x256xf32>
      %563 = arith.addf %560, %562 : vector<2x256xf32>
      %cst_154 = arith.constant 0.000000e+00 : f32
      %564 = vector.broadcast %cst_154 : f32 to vector<2x256xf32>
      %565 = arith.select %40, %563, %564 : vector<2x256xi1>, vector<2x256xf32>
      %566 = arith.addf %554, %565 : vector<2x256xf32>
      %c41 = arith.constant 41 : index
      %567 = memref.load %arg2[%c41] : memref<98xf32, #tpu.memory_space<smem>>
      %c90 = arith.constant 90 : index
      %568 = memref.load %arg2[%c90] : memref<98xf32, #tpu.memory_space<smem>>
      %c253_i32_155 = arith.constant 253 : i32
      %569 = tpu.dynamic_rotate %495 by %c253_i32_155 dim 1 : vector<2x256xf32>, i32 -> vector<2x256xf32>
      %c253_i32_156 = arith.constant 253 : i32
      %570 = tpu.dynamic_rotate %498 by %c253_i32_156 dim 1 : vector<2x256xf32>, i32 -> vector<2x256xf32>
      %571 = vector.broadcast %567 : f32 to vector<2x256xf32>
      %572 = arith.mulf %571, %569 : vector<2x256xf32>
      %573 = vector.broadcast %568 : f32 to vector<2x256xf32>
      %574 = arith.mulf %573, %570 : vector<2x256xf32>
      %575 = arith.addf %572, %574 : vector<2x256xf32>
      %cst_157 = arith.constant 0.000000e+00 : f32
      %576 = vector.broadcast %cst_157 : f32 to vector<2x256xf32>
      %577 = arith.select %42, %575, %576 : vector<2x256xi1>, vector<2x256xf32>
      %578 = arith.addf %566, %577 : vector<2x256xf32>
      %cst_158 = arith.constant -3.000000e+00 : f32
      %579 = vector.broadcast %cst_158 : f32 to vector<2x256xf32>
      %580 = arith.cmpf oge, %27, %579 : vector<2x256xf32>
      %cst_159 = arith.constant 1.300000e+01 : f32
      %581 = vector.broadcast %cst_159 : f32 to vector<2x256xf32>
      %582 = arith.cmpf olt, %27, %581 : vector<2x256xf32>
      %583 = arith.andi %580, %582 : vector<2x256xi1>
      %c208_i32 = arith.constant 208 : i32
      %584 = tpu.dynamic_rotate %19 by %c208_i32 dim 1 : vector<2x256xf32>, i32 -> vector<2x256xf32>
      %cst_160 = arith.constant 0.000000e+00 : f32
      %585 = vector.broadcast %cst_160 : f32 to vector<2x256xf32>
      %586 = arith.select %583, %584, %585 : vector<2x256xi1>, vector<2x256xf32>
      %c208_i32_161 = arith.constant 208 : i32
      %587 = tpu.dynamic_rotate %20 by %c208_i32_161 dim 1 : vector<2x256xf32>, i32 -> vector<2x256xf32>
      %cst_162 = arith.constant 0.000000e+00 : f32
      %588 = vector.broadcast %cst_162 : f32 to vector<2x256xf32>
      %589 = arith.select %583, %587, %588 : vector<2x256xi1>, vector<2x256xf32>
      %c42 = arith.constant 42 : index
      %590 = memref.load %arg2[%c42] : memref<98xf32, #tpu.memory_space<smem>>
      %c91 = arith.constant 91 : index
      %591 = memref.load %arg2[%c91] : memref<98xf32, #tpu.memory_space<smem>>
      %c3_i32_163 = arith.constant 3 : i32
      %592 = tpu.dynamic_rotate %586 by %c3_i32_163 dim 1 : vector<2x256xf32>, i32 -> vector<2x256xf32>
      %c3_i32_164 = arith.constant 3 : i32
      %593 = tpu.dynamic_rotate %589 by %c3_i32_164 dim 1 : vector<2x256xf32>, i32 -> vector<2x256xf32>
      %594 = vector.broadcast %590 : f32 to vector<2x256xf32>
      %595 = arith.mulf %594, %592 : vector<2x256xf32>
      %596 = vector.broadcast %591 : f32 to vector<2x256xf32>
      %597 = arith.mulf %596, %593 : vector<2x256xf32>
      %598 = arith.addf %595, %597 : vector<2x256xf32>
      %cst_165 = arith.constant 0.000000e+00 : f32
      %599 = vector.broadcast %cst_165 : f32 to vector<2x256xf32>
      %600 = arith.select %32, %598, %599 : vector<2x256xi1>, vector<2x256xf32>
      %601 = arith.addf %578, %600 : vector<2x256xf32>
      %c43 = arith.constant 43 : index
      %602 = memref.load %arg2[%c43] : memref<98xf32, #tpu.memory_space<smem>>
      %c92 = arith.constant 92 : index
      %603 = memref.load %arg2[%c92] : memref<98xf32, #tpu.memory_space<smem>>
      %c2_i32_166 = arith.constant 2 : i32
      %604 = tpu.dynamic_rotate %586 by %c2_i32_166 dim 1 : vector<2x256xf32>, i32 -> vector<2x256xf32>
      %c2_i32_167 = arith.constant 2 : i32
      %605 = tpu.dynamic_rotate %589 by %c2_i32_167 dim 1 : vector<2x256xf32>, i32 -> vector<2x256xf32>
      %606 = vector.broadcast %602 : f32 to vector<2x256xf32>
      %607 = arith.mulf %606, %604 : vector<2x256xf32>
      %608 = vector.broadcast %603 : f32 to vector<2x256xf32>
      %609 = arith.mulf %608, %605 : vector<2x256xf32>
      %610 = arith.addf %607, %609 : vector<2x256xf32>
      %cst_168 = arith.constant 0.000000e+00 : f32
      %611 = vector.broadcast %cst_168 : f32 to vector<2x256xf32>
      %612 = arith.select %34, %610, %611 : vector<2x256xi1>, vector<2x256xf32>
      %613 = arith.addf %601, %612 : vector<2x256xf32>
      %c44 = arith.constant 44 : index
      %614 = memref.load %arg2[%c44] : memref<98xf32, #tpu.memory_space<smem>>
      %c93 = arith.constant 93 : index
      %615 = memref.load %arg2[%c93] : memref<98xf32, #tpu.memory_space<smem>>
      %c1_i32_169 = arith.constant 1 : i32
      %616 = tpu.dynamic_rotate %586 by %c1_i32_169 dim 1 : vector<2x256xf32>, i32 -> vector<2x256xf32>
      %c1_i32_170 = arith.constant 1 : i32
      %617 = tpu.dynamic_rotate %589 by %c1_i32_170 dim 1 : vector<2x256xf32>, i32 -> vector<2x256xf32>
      %618 = vector.broadcast %614 : f32 to vector<2x256xf32>
      %619 = arith.mulf %618, %616 : vector<2x256xf32>
      %620 = vector.broadcast %615 : f32 to vector<2x256xf32>
      %621 = arith.mulf %620, %617 : vector<2x256xf32>
      %622 = arith.addf %619, %621 : vector<2x256xf32>
      %cst_171 = arith.constant 0.000000e+00 : f32
      %623 = vector.broadcast %cst_171 : f32 to vector<2x256xf32>
      %624 = arith.select %36, %622, %623 : vector<2x256xi1>, vector<2x256xf32>
      %625 = arith.addf %613, %624 : vector<2x256xf32>
      %c45 = arith.constant 45 : index
      %626 = memref.load %arg2[%c45] : memref<98xf32, #tpu.memory_space<smem>>
      %c94 = arith.constant 94 : index
      %627 = memref.load %arg2[%c94] : memref<98xf32, #tpu.memory_space<smem>>
      %628 = vector.broadcast %626 : f32 to vector<2x256xf32>
      %629 = arith.mulf %628, %586 : vector<2x256xf32>
      %630 = vector.broadcast %627 : f32 to vector<2x256xf32>
      %631 = arith.mulf %630, %589 : vector<2x256xf32>
      %632 = arith.addf %629, %631 : vector<2x256xf32>
      %633 = arith.addf %625, %632 : vector<2x256xf32>
      %c46 = arith.constant 46 : index
      %634 = memref.load %arg2[%c46] : memref<98xf32, #tpu.memory_space<smem>>
      %c95 = arith.constant 95 : index
      %635 = memref.load %arg2[%c95] : memref<98xf32, #tpu.memory_space<smem>>
      %c255_i32_172 = arith.constant 255 : i32
      %636 = tpu.dynamic_rotate %586 by %c255_i32_172 dim 1 : vector<2x256xf32>, i32 -> vector<2x256xf32>
      %c255_i32_173 = arith.constant 255 : i32
      %637 = tpu.dynamic_rotate %589 by %c255_i32_173 dim 1 : vector<2x256xf32>, i32 -> vector<2x256xf32>
      %638 = vector.broadcast %634 : f32 to vector<2x256xf32>
      %639 = arith.mulf %638, %636 : vector<2x256xf32>
      %640 = vector.broadcast %635 : f32 to vector<2x256xf32>
      %641 = arith.mulf %640, %637 : vector<2x256xf32>
      %642 = arith.addf %639, %641 : vector<2x256xf32>
      %cst_174 = arith.constant 0.000000e+00 : f32
      %643 = vector.broadcast %cst_174 : f32 to vector<2x256xf32>
      %644 = arith.select %38, %642, %643 : vector<2x256xi1>, vector<2x256xf32>
      %645 = arith.addf %633, %644 : vector<2x256xf32>
      %c47 = arith.constant 47 : index
      %646 = memref.load %arg2[%c47] : memref<98xf32, #tpu.memory_space<smem>>
      %c96 = arith.constant 96 : index
      %647 = memref.load %arg2[%c96] : memref<98xf32, #tpu.memory_space<smem>>
      %c254_i32_175 = arith.constant 254 : i32
      %648 = tpu.dynamic_rotate %586 by %c254_i32_175 dim 1 : vector<2x256xf32>, i32 -> vector<2x256xf32>
      %c254_i32_176 = arith.constant 254 : i32
      %649 = tpu.dynamic_rotate %589 by %c254_i32_176 dim 1 : vector<2x256xf32>, i32 -> vector<2x256xf32>
      %650 = vector.broadcast %646 : f32 to vector<2x256xf32>
      %651 = arith.mulf %650, %648 : vector<2x256xf32>
      %652 = vector.broadcast %647 : f32 to vector<2x256xf32>
      %653 = arith.mulf %652, %649 : vector<2x256xf32>
      %654 = arith.addf %651, %653 : vector<2x256xf32>
      %cst_177 = arith.constant 0.000000e+00 : f32
      %655 = vector.broadcast %cst_177 : f32 to vector<2x256xf32>
      %656 = arith.select %40, %654, %655 : vector<2x256xi1>, vector<2x256xf32>
      %657 = arith.addf %645, %656 : vector<2x256xf32>
      %c48 = arith.constant 48 : index
      %658 = memref.load %arg2[%c48] : memref<98xf32, #tpu.memory_space<smem>>
      %c97 = arith.constant 97 : index
      %659 = memref.load %arg2[%c97] : memref<98xf32, #tpu.memory_space<smem>>
      %c253_i32_178 = arith.constant 253 : i32
      %660 = tpu.dynamic_rotate %586 by %c253_i32_178 dim 1 : vector<2x256xf32>, i32 -> vector<2x256xf32>
      %c253_i32_179 = arith.constant 253 : i32
      %661 = tpu.dynamic_rotate %589 by %c253_i32_179 dim 1 : vector<2x256xf32>, i32 -> vector<2x256xf32>
      %662 = vector.broadcast %658 : f32 to vector<2x256xf32>
      %663 = arith.mulf %662, %660 : vector<2x256xf32>
      %664 = vector.broadcast %659 : f32 to vector<2x256xf32>
      %665 = arith.mulf %664, %661 : vector<2x256xf32>
      %666 = arith.addf %663, %665 : vector<2x256xf32>
      %cst_180 = arith.constant 0.000000e+00 : f32
      %667 = vector.broadcast %cst_180 : f32 to vector<2x256xf32>
      %668 = arith.select %42, %666, %667 : vector<2x256xi1>, vector<2x256xf32>
      %669 = arith.addf %657, %668 : vector<2x256xf32>
      %670 = arith.negf %669 : vector<2x256xf32>
      %671 = math.exp %670 : vector<2x256xf32>
      %cst_181 = arith.constant 1.000000e+00 : f32
      %672 = vector.broadcast %cst_181 : f32 to vector<2x256xf32>
      %673 = arith.addf %672, %671 : vector<2x256xf32>
      %674 = arith.divf %672, %673 : vector<2x256xf32>
      %c0_182 = arith.constant 0 : index
      %c0_183 = arith.constant 0 : index
      %675 = vector.load %arg4[%c0_182, %c0_183] : memref<2x256xf32, #tpu.memory_space<vmem>>, vector<2x256xf32>
      tpu.vector_store %arg4[%c0_182, %c0_183], %674 {strides = array<i32>} : memref<2x256xf32, #tpu.memory_space<vmem>>, vector<2x256xf32>,
    } else {
    }
    return
  }
  func.func @transform_0(%arg0: i32, %arg1: i32) -> i32 {
    %c0_i32 = arith.constant 0 : i32
    %c0_i32_0 = arith.constant 0 : i32
    return %c0_i32 : i32
  }
  func.func @transform_1(%arg0: i32, %arg1: i32) -> (i32, i32, i32) {
    %c0_i32 = arith.constant 0 : i32
    %c0_i32_0 = arith.constant 0 : i32
    return %arg0, %arg1, %c0_i32 : i32, i32, i32
  }
  func.func @transform_2(%arg0: i32, %arg1: i32) -> (i32, i32) {
    %c0_i32 = arith.constant 0 : i32
    %c0_i32_0 = arith.constant 0 : i32
    return %arg0, %c0_i32 : i32, i32
  }
}

</mosaic_0001>

<llo_original>
// kernel: tpu_custom_call.1
$region0: #{tpu_custom_call.1}
  #allocation0 [shape = 'u32[]', space=smem, size = 0x4, offset = 0x4, fixed_abs, tag = 'smem constant byte address 0x4 - core index']
  #allocation1 [shape = 'u32[144,128]{1,0:T(1,128)}', space=vmem, size = 0x12000, scoped, tag = 'internal scratch']
  #allocation2 [shape = 'f32[2,256]{1,0:T(2,128)}', space=vmem, size = 0x800, scoped, tag = 'scratch operand']
  #allocation3 [shape = 'f32[2,256]{1,0:T(2,128)}', space=vmem, size = 0x800, scoped, tag = 'scratch operand']
  %s0 = inlined_call_operand.hbm [shape: f32[98], index: 0, kind: input, shape index: {}]
  %s1 = inlined_call_operand.hbm [shape: f32[2,4,256], index: 1, kind: input, shape index: {}]
  %s2 = inlined_call_operand.hbm [shape: f32[2,256], index: 2, kind: output, shape index: {}]
  %s3 = sld [smem:[#allocation0]]
  $region34: #{tpu_custom_call.1} parent=0
    _
  %s5 = ssub.s32 1, %s3
  %s6 = scalar_select 0, %s5, %s3
  $region1: #{tpu_custom_call.1} parent=0
    #allocation4 [shape = 'u8[512]{0}', space=smem, size = 0x200, scoped, tag = 'input window, operand 0, single buffered']
    #allocation5 [shape = 's32[1]{0}', space=sflag, size = 0x4, scoped, tag = 'scoped memory for tpu_custom_call.1']
    #allocation6 [shape = 's32[1]{0}', space=sflag, size = 0x4, scoped, tag = 'scoped memory for tpu_custom_call.1']
    #allocation7 [shape = 's32[1]{0}', space=sflag, size = 0x4, scoped, tag = 'scoped memory for tpu_custom_call.1']
    #allocation8 [shape = 'u8[8192]{0}', space=vmem, size = 0x2000, scoped, tag = 'input window, operand 1, single buffered']
    #allocation9 [shape = 'u8[2048]{0}', space=vmem, size = 0x800, scoped, tag = 'output window, operand 0, single buffered']
    %7 = vsyncpa [#allocation7], 0
    %8 = vsyncpa [#allocation5], 0
    %9 = vsyncpa [#allocation6], 0
    // Predicated region
    $region2: #{tpu_custom_call.1} parent=1 // pred_check
      _
    $region3: #{tpu_custom_call.1} parent=1 // pred_check_branch
      %11 = sbr.rel (0) target = $region5
    $region4: #{tpu_custom_call.1} parent=1 // pred_region
      %s13 = ssub.s32 16, 16
      %14 = vsyncadd [#allocation7], %s13
      %17 = dma.hbm_to_smem %s0, 16, [#allocation4], [#allocation7]
    $region5: #{tpu_custom_call.1} parent=1 // pred_fallthru
      _
    // Predicated region
    $region6: #{tpu_custom_call.1} parent=1 // pred_check
      _
    $region7: #{tpu_custom_call.1} parent=1 // pred_check_branch
      %19 = sbr.rel (0) target = $region9
    $region8: #{tpu_custom_call.1} parent=1 // pred_region
      %s21 = ssub.s32 256, 256
      %22 = vsyncadd [#allocation5], %s21
      %s23 = sshll.u32 [#allocation8], 4
      %s24 = int_to_ptr.vmem [resolvable:$true] %s23
      %29 = dma.hbm_to_vmem [thread:$0]  %s1, 256, %s24, [#allocation5], 128, 128, 8
    $region9: #{tpu_custom_call.1} parent=1 // pred_fallthru
      _
    // Predicated region
    $region10: #{tpu_custom_call.1} parent=1 // pred_check
      _
    $region11: #{tpu_custom_call.1} parent=1 // pred_check_branch
      %31 = sbr.rel (0) target = $region13
    $region12: #{tpu_custom_call.1} parent=1 // pred_region
      %32 = dma.done [#allocation7], 16
    $region13: #{tpu_custom_call.1} parent=1 // pred_fallthru
      _
    // Predicated region
    $region14: #{tpu_custom_call.1} parent=1 // pred_check
      _
    $region15: #{tpu_custom_call.1} parent=1 // pred_check_branch
      %34 = sbr.rel (0) target = $region17
    $region16: #{tpu_custom_call.1} parent=1 // pred_region
      %35 = dma.done [#allocation5], 256
    $region17: #{tpu_custom_call.1} parent=1 // pred_fallthru
      _
    %36 = sfence
    %p37 = scmp.eq.s32.totalorder 0, 0
    // Predicated region
    $region18: #{tpu_custom_call.1} parent=1 // pred_check
      %p38 = pneg %p37
    $region19: #{tpu_custom_call.1} parent=1 // pred_check_branch
      %40 = sbr.rel (%p38) target = $region21
    $region20: #{tpu_custom_call.1} parent=1 // pred_region
      %41 = vst [vmem:[#allocation2] sm:$0xf] 0.0
      %42 = vst [vmem:[#allocation3] sm:$0xf] -inf
    $region21: #{tpu_custom_call.1} parent=1 // pred_fallthru
      _
    %v43 = vld [vmem:[#allocation8] sm:$0xff]
    %v44 = vld [vmem:[#allocation8 + $0x8] sm:$0xff]
    %v47 = vcombine.high %v43, %v43
    %v48 = vcombine.high %v44, %v44
    %vm51 = vcmask 1043456
    %v52 = vsel %vm51, %v43, 0.0
    %v53 = vrot.slane %v52, 4
    %v54 = vadd.f32 %v52, %v53
    %v55 = vrot.slane %v54, 2
    %v56 = vadd.f32 %v54, %v55
    %v57 = vrot.slane %v56, 1
    %v58 = vadd.f32 %v56, %v57
    %v59 = vsel %vm51, %v47, 0.0
    %v60 = vrot.slane %v59, 4
    %v61 = vadd.f32 %v59, %v60
    %v62 = vrot.slane %v61, 2
    %v63 = vadd.f32 %v61, %v62
    %v64 = vrot.slane %v63, 1
    %v65 = vadd.f32 %v63, %v64
    %v66 = vsel %vm51, %v44, 0.0
    %v67 = vrot.slane %v66, 4
    %v68 = vadd.f32 %v66, %v67
    %v69 = vrot.slane %v68, 2
    %v70 = vadd.f32 %v68, %v69
    %v71 = vrot.slane %v70, 1
    %v72 = vadd.f32 %v70, %v71
    %v73 = vsel %vm51, %v48, 0.0
    %v74 = vrot.slane %v73, 4
    %v75 = vadd.f32 %v73, %v74
    %v76 = vrot.slane %v75, 2
    %v77 = vadd.f32 %v75, %v76
    %v78 = vrot.slane %v77, 1
    %v79 = vadd.f32 %v77, %v78
    %v80 = vadd.f32 %v58, 0.0
    %v81 = vadd.f32 %v65, 0.0
    %v82 = vadd.f32 %v72, 0.0
    %v83 = vadd.f32 %v79, 0.0
    %v84 = vsel %vm51, %v43, -inf
    %v85 = vrot.slane %v84, 4
    %v86 = vmax.f32 %v84, %v85
    %v87 = vrot.slane %v86, 2
    %v88 = vmax.f32 %v86, %v87
    %v89 = vrot.slane %v88, 1
    %v90 = vmax.f32 %v88, %v89
    %v91 = vsel %vm51, %v47, -inf
    %v92 = vrot.slane %v91, 4
    %v93 = vmax.f32 %v91, %v92
    %v94 = vrot.slane %v93, 2
    %v95 = vmax.f32 %v93, %v94
    %v96 = vrot.slane %v95, 1
    %v97 = vmax.f32 %v95, %v96
    %v98 = vsel %vm51, %v44, -inf
    %v99 = vrot.slane %v98, 4
    %v100 = vmax.f32 %v98, %v99
    %v101 = vrot.slane %v100, 2
    %v102 = vmax.f32 %v100, %v101
    %v103 = vrot.slane %v102, 1
    %v104 = vmax.f32 %v102, %v103
    %v105 = vsel %vm51, %v48, -inf
    %v106 = vrot.slane %v105, 4
    %v107 = vmax.f32 %v105, %v106
    %v108 = vrot.slane %v107, 2
    %v109 = vmax.f32 %v107, %v108
    %v110 = vrot.slane %v109, 1
    %v111 = vmax.f32 %v109, %v110
    %v112 = vld [vmem:[#allocation2] sm:$0xf]
    %v117 = vcombine.low %v80, %v81
    %v119 = vunpack.c.l.s4 1983009808
    %v120 = vunpack.c.0.s8 %v119
    %v121 = vlaneseq
    %v122 = vshrl.u32 %v121, 7
    %v123 = vsub.s32 %v120, %v122
    %v124 = vrot.slane %v117, %v123
    %v125 = vcombine.low %v82, %v83
    %v127 = vunpack.c.l.s4 1983009808
    %v128 = vunpack.c.0.s8 %v127
    %v129 = vlaneseq
    %v130 = vshrl.u32 %v129, 7
    %v131 = vsub.s32 %v128, %v130
    %v132 = vrot.slane %v125, %v131
    %vm133 = vcmask 1044484
    %v134 = vsel %vm133, %v124, %v124
    %vm135 = vcmask 1046534
    %v136 = vsel %vm135, %v124, %v134
    %v137 = vrot.slane %v132, 7
    %vm138 = vcmask 1041409
    %v139 = vsel %vm138, %v137, %v136
    %vm140 = vcmask 1043459
    %v141 = vsel %vm140, %v137, %v139
    %vm142 = vcmask 1045509
    %v143 = vsel %vm142, %v137, %v141
    %vm144 = vcmask 1047559
    %v145 = vsel %vm144, %v137, %v143
    %v147 = vadd.f32 %v112, %v145
    %148 = vst [vmem:[#allocation2] sm:$0xf] %v147
    %v149 = vld [vmem:[#allocation3] sm:$0xf]
    %v154 = vcombine.low %v90, %v97
    %v156 = vunpack.c.l.s4 1983009808
    %v157 = vunpack.c.0.s8 %v156
    %v158 = vlaneseq
    %v159 = vshrl.u32 %v158, 7
    %v160 = vsub.s32 %v157, %v159
    %v161 = vrot.slane %v154, %v160
    %v162 = vcombine.low %v104, %v111
    %v164 = vunpack.c.l.s4 1983009808
    %v165 = vunpack.c.0.s8 %v164
    %v166 = vlaneseq
    %v167 = vshrl.u32 %v166, 7
    %v168 = vsub.s32 %v165, %v167
    %v169 = vrot.slane %v162, %v168
    %v170 = vsel %vm133, %v161, %v161
    %v171 = vsel %vm135, %v161, %v170
    %v172 = vrot.slane %v169, 7
    %v173 = vsel %vm138, %v172, %v171
    %v174 = vsel %vm140, %v172, %v173
    %v175 = vsel %vm142, %v172, %v174
    %v176 = vsel %vm144, %v172, %v175
    %v178 = vmax.f32 %v149, %v176
    %179 = vst [vmem:[#allocation3] sm:$0xf] %v178
    // Predicated region
    $region22: #{tpu_custom_call.1} parent=1 // pred_check
      %p180 = pneg %p37
    $region23: #{tpu_custom_call.1} parent=1 // pred_check_branch
      %182 = sbr.rel (%p180) target = $region25
    $region24: #{tpu_custom_call.1} parent=1 // pred_region
      %v183 = vld [vmem:[#allocation2] sm:$0xf]
      %v184 = vld [vmem:[#allocation3] sm:$0xf]
      %v185 = vlaneseq
      %v186 = vand.u32 %v185, 127
      %v187 = vadd.s32 %v186, 128
      %v188 = vcvt.s32.f32 %v186
      %v189 = vcvt.s32.f32 %v187
      %v190 = vadd.f32 %v188, 0.5
      %v191 = vadd.f32 %v189, 0.5
      %v192 = vmul.f32 %v190, 0.0625
      %v193 = vmul.f32 %v191, 0.0625
      %v194 = vfloor.f32 %v192
      %v195 = vfloor.f32 %v193
      %v196 = vmul.f32 %v194, 16.0
      %v197 = vmul.f32 %v195, 16.0
      %v198 = vsub.f32 %v188, %v196
      %v199 = vsub.f32 %v189, %v197
      %vm200 = vcmp.ge.f32.partialorder %v198, 3.0
      %vm201 = vcmp.ge.f32.partialorder %v199, 3.0
      %vm202 = vcmp.ge.f32.partialorder %v198, 2.0
      %vm203 = vcmp.ge.f32.partialorder %v199, 2.0
      %vm204 = vcmp.ge.f32.partialorder %v198, 1.0
      %vm205 = vcmp.ge.f32.partialorder %v199, 1.0
      %vm206 = vcmp.lt.f32.partialorder %v198, 15.0
      %vm207 = vcmp.lt.f32.partialorder %v199, 15.0
      %vm208 = vcmp.lt.f32.partialorder %v198, 14.0
      %vm209 = vcmp.lt.f32.partialorder %v199, 14.0
      %vm210 = vcmp.lt.f32.partialorder %v198, 13.0
      %vm211 = vcmp.lt.f32.partialorder %v199, 13.0
      %vm212 = vcmp.ge.f32.partialorder %v194, 3.0
      %vm213 = vcmp.ge.f32.partialorder %v195, 3.0
      %vm214 = vcmp.lt.f32.partialorder %v194, 19.0
      %vm215 = vcmp.lt.f32.partialorder %v195, 19.0
      %vm216 = vmand %vm212, %vm214
      %vm217 = vmand %vm213, %vm215
      %v220 = vunpack.c.l.s4 1983009808
      %v221 = vunpack.c.0.s8 %v220
      %v222 = vlaneseq
      %v223 = vshrl.u32 %v222, 7
      %v224 = vsub.s32 %v221, %v223
      %v225 = vrot.slane %v183, %v224
      %v226 = vcombine.high %v225, %v225
      %229 = vrot.lane.b32.xlu0 %v225, 48
      %v230 = vpop.permute.xlu0 %229
      %231 = vrot.lane.b32.xlu0 %v226, 48
      %v232 = vpop.permute.xlu0 %231
      %vm233 = vcmp.lt.s32.totalorder %v186, 48
      %v234 = vsel %vm233, %v230, %v232
      %v235 = vsel %vm233, %v232, %v230
      %v236 = vsel %vm216, %v235, 0.0
      %v237 = vsel %vm217, %v234, 0.0
      %v240 = vunpack.c.l.s4 1983009808
      %v241 = vunpack.c.0.s8 %v240
      %v242 = vlaneseq
      %v243 = vshrl.u32 %v242, 7
      %v244 = vsub.s32 %v241, %v243
      %v245 = vrot.slane %v184, %v244
      %v246 = vcombine.high %v245, %v245
      %249 = vrot.lane.b32.xlu0 %v245, 48
      %v250 = vpop.permute.xlu0 %249
      %251 = vrot.lane.b32.xlu0 %v246, 48
      %v252 = vpop.permute.xlu0 %251
      %v253 = vsel %vm233, %v250, %v252
      %v254 = vsel %vm233, %v252, %v250
      %v255 = vsel %vm216, %v254, 0.0
      %v256 = vsel %vm217, %v253, 0.0
      %s257 = sld [smem:[#allocation4]]
      %s258 = sld [smem:[#allocation4 + $0x31]]
      %259 = vrot.lane.b32.xlu0 %v236, 3
      %v260 = vpop.permute.xlu0 %259
      %261 = vrot.lane.b32.xlu0 %v237, 3
      %v262 = vpop.permute.xlu0 %261
      %vm263 = vcmp.lt.s32.totalorder %v186, 3
      %v264 = vsel %vm263, %v260, %v262
      %v265 = vsel %vm263, %v262, %v260
      %266 = vrot.lane.b32.xlu0 %v255, 3
      %v267 = vpop.permute.xlu0 %266
      %268 = vrot.lane.b32.xlu0 %v256, 3
      %v269 = vpop.permute.xlu0 %268
      %v270 = vsel %vm263, %v267, %v269
      %v271 = vsel %vm263, %v269, %v267
      %v272 = vstv %s257
      %v273 = vmul.f32 %v272, %v265
      %v274 = vmul.f32 %v272, %v264
      %v275 = vstv %s258
      %v276 = vmul.f32 %v275, %v271
      %v277 = vmul.f32 %v275, %v270
      %v278 = vadd.f32 %v273, %v276
      %v279 = vadd.f32 %v274, %v277
      %v280 = vsel %vm200, %v278, 0.0
      %v281 = vsel %vm201, %v279, 0.0
      %v282 = vadd.f32 %v280, 0.0
      %v283 = vadd.f32 %v281, 0.0
      %s284 = sld [smem:[#allocation4 + $0x1]]
      %s285 = sld [smem:[#allocation4 + $0x32]]
      %286 = vrot.lane.b32.xlu0 %v236, 2
      %v287 = vpop.permute.xlu0 %286
      %288 = vrot.lane.b32.xlu0 %v237, 2
      %v289 = vpop.permute.xlu0 %288
      %vm290 = vcmp.lt.s32.totalorder %v186, 2
      %v291 = vsel %vm290, %v287, %v289
      %v292 = vsel %vm290, %v289, %v287
      %293 = vrot.lane.b32.xlu0 %v255, 2
      %v294 = vpop.permute.xlu0 %293
      %295 = vrot.lane.b32.xlu0 %v256, 2
      %v296 = vpop.permute.xlu0 %295
      %v297 = vsel %vm290, %v294, %v296
      %v298 = vsel %vm290, %v296, %v294
      %v299 = vstv %s284
      %v300 = vmul.f32 %v299, %v292
      %v301 = vmul.f32 %v299, %v291
      %v302 = vstv %s285
      %v303 = vmul.f32 %v302, %v298
      %v304 = vmul.f32 %v302, %v297
      %v305 = vadd.f32 %v300, %v303
      %v306 = vadd.f32 %v301, %v304
      %v307 = vsel %vm202, %v305, 0.0
      %v308 = vsel %vm203, %v306, 0.0
      %v309 = vadd.f32 %v282, %v307
      %v310 = vadd.f32 %v283, %v308
      %s311 = sld [smem:[#allocation4 + $0x2]]
      %s312 = sld [smem:[#allocation4 + $0x33]]
      %313 = vrot.lane.b32.xlu0 %v236, 1
      %v314 = vpop.permute.xlu0 %313
      %315 = vrot.lane.b32.xlu0 %v237, 1
      %v316 = vpop.permute.xlu0 %315
      %vm317 = vcmp.lt.s32.totalorder %v186, 1
      %v318 = vsel %vm317, %v314, %v316
      %v319 = vsel %vm317, %v316, %v314
      %320 = vrot.lane.b32.xlu0 %v255, 1
      %v321 = vpop.permute.xlu0 %320
      %322 = vrot.lane.b32.xlu0 %v256, 1
      %v323 = vpop.permute.xlu0 %322
      %v324 = vsel %vm317, %v321, %v323
      %v325 = vsel %vm317, %v323, %v321
      %v326 = vstv %s311
      %v327 = vmul.f32 %v326, %v319
      %v328 = vmul.f32 %v326, %v318
      %v329 = vstv %s312
      %v330 = vmul.f32 %v329, %v325
      %v331 = vmul.f32 %v329, %v324
      %v332 = vadd.f32 %v327, %v330
      %v333 = vadd.f32 %v328, %v331
      %v334 = vsel %vm204, %v332, 0.0
      %v335 = vsel %vm205, %v333, 0.0
      %v336 = vadd.f32 %v309, %v334
      %v337 = vadd.f32 %v310, %v335
      %s338 = sld [smem:[#allocation4 + $0x3]]
      %s339 = sld [smem:[#allocation4 + $0x34]]
      %v340 = vstv %s338
      %v341 = vmul.f32 %v340, %v236
      %v342 = vmul.f32 %v340, %v237
      %v343 = vstv %s339
      %v344 = vmul.f32 %v343, %v255
      %v345 = vmul.f32 %v343, %v256
      %v346 = vadd.f32 %v341, %v344
      %v347 = vadd.f32 %v342, %v345
      %v348 = vadd.f32 %v336, %v346
      %v349 = vadd.f32 %v337, %v347
      %s350 = sld [smem:[#allocation4 + $0x4]]
      %s351 = sld [smem:[#allocation4 + $0x35]]
      %352 = vrot.lane.b32.xlu0 %v236, 127
      %v353 = vpop.permute.xlu0 %352
      %354 = vrot.lane.b32.xlu0 %v237, 127
      %v355 = vpop.permute.xlu0 %354
      %vm356 = vcmp.lt.s32.totalorder %v186, 127
      %v357 = vsel %vm356, %v353, %v355
      %v358 = vsel %vm356, %v355, %v353
      %359 = vrot.lane.b32.xlu0 %v255, 127
      %v360 = vpop.permute.xlu0 %359
      %361 = vrot.lane.b32.xlu0 %v256, 127
      %v362 = vpop.permute.xlu0 %361
      %v363 = vsel %vm356, %v360, %v362
      %v364 = vsel %vm356, %v362, %v360
      %v365 = vstv %s350
      %v366 = vmul.f32 %v365, %v357
      %v367 = vmul.f32 %v365, %v358
      %v368 = vstv %s351
      %v369 = vmul.f32 %v368, %v363
      %v370 = vmul.f32 %v368, %v364
      %v371 = vadd.f32 %v366, %v369
      %v372 = vadd.f32 %v367, %v370
      %v373 = vsel %vm206, %v371, 0.0
      %v374 = vsel %vm207, %v372, 0.0
      %v375 = vadd.f32 %v348, %v373
      %v376 = vadd.f32 %v349, %v374
      %s377 = sld [smem:[#allocation4 + $0x5]]
      %s378 = sld [smem:[#allocation4 + $0x36]]
      %379 = vrot.lane.b32.xlu0 %v236, 126
      %v380 = vpop.permute.xlu0 %379
      %381 = vrot.lane.b32.xlu0 %v237, 126
      %v382 = vpop.permute.xlu0 %381
      %vm383 = vcmp.lt.s32.totalorder %v186, 126
      %v384 = vsel %vm383, %v380, %v382
      %v385 = vsel %vm383, %v382, %v380
      %386 = vrot.lane.b32.xlu0 %v255, 126
      %v387 = vpop.permute.xlu0 %386
      %388 = vrot.lane.b32.xlu0 %v256, 126
      %v389 = vpop.permute.xlu0 %388
      %v390 = vsel %vm383, %v387, %v389
      %v391 = vsel %vm383, %v389, %v387
      %v392 = vstv %s377
      %v393 = vmul.f32 %v392, %v384
      %v394 = vmul.f32 %v392, %v385
      %v395 = vstv %s378
      %v396 = vmul.f32 %v395, %v390
      %v397 = vmul.f32 %v395, %v391
      %v398 = vadd.f32 %v393, %v396
      %v399 = vadd.f32 %v394, %v397
      %v400 = vsel %vm208, %v398, 0.0
      %v401 = vsel %vm209, %v399, 0.0
      %v402 = vadd.f32 %v375, %v400
      %v403 = vadd.f32 %v376, %v401
      %s404 = sld [smem:[#allocation4 + $0x6]]
      %s405 = sld [smem:[#allocation4 + $0x37]]
      %406 = vrot.lane.b32.xlu0 %v236, 125
      %v407 = vpop.permute.xlu0 %406
      %408 = vrot.lane.b32.xlu0 %v237, 125
      %v409 = vpop.permute.xlu0 %408
      %vm410 = vcmp.lt.s32.totalorder %v186, 125
      %v411 = vsel %vm410, %v407, %v409
      %v412 = vsel %vm410, %v409, %v407
      %413 = vrot.lane.b32.xlu0 %v255, 125
      %v414 = vpop.permute.xlu0 %413
      %415 = vrot.lane.b32.xlu0 %v256, 125
      %v416 = vpop.permute.xlu0 %415
      %v417 = vsel %vm410, %v414, %v416
      %v418 = vsel %vm410, %v416, %v414
      %v419 = vstv %s404
      %v420 = vmul.f32 %v419, %v411
      %v421 = vmul.f32 %v419, %v412
      %v422 = vstv %s405
      %v423 = vmul.f32 %v422, %v417
      %v424 = vmul.f32 %v422, %v418
      %v425 = vadd.f32 %v420, %v423
      %v426 = vadd.f32 %v421, %v424
      %v427 = vsel %vm210, %v425, 0.0
      %v428 = vsel %vm211, %v426, 0.0
      %v429 = vadd.f32 %v402, %v427
      %v430 = vadd.f32 %v403, %v428
      %vm431 = vcmp.ge.f32.partialorder %v194, 2.0
      %vm432 = vcmp.ge.f32.partialorder %v195, 2.0
      %vm433 = vcmp.lt.f32.partialorder %v194, 18.0
      %vm434 = vcmp.lt.f32.partialorder %v195, 18.0
      %vm435 = vmand %vm431, %vm433
      %vm436 = vmand %vm432, %vm434
      %437 = vrot.lane.b32.xlu0 %v225, 32
      %v438 = vpop.permute.xlu0 %437
      %439 = vrot.lane.b32.xlu0 %v226, 32
      %v440 = vpop.permute.xlu0 %439
      %vm441 = vcmp.lt.s32.totalorder %v186, 32
      %v442 = vsel %vm441, %v438, %v440
      %v443 = vsel %vm441, %v440, %v438
      %v444 = vsel %vm435, %v443, 0.0
      %v445 = vsel %vm436, %v442, 0.0
      %446 = vrot.lane.b32.xlu0 %v245, 32
      %v447 = vpop.permute.xlu0 %446
      %448 = vrot.lane.b32.xlu0 %v246, 32
      %v449 = vpop.permute.xlu0 %448
      %v450 = vsel %vm441, %v447, %v449
      %v451 = vsel %vm441, %v449, %v447
      %v452 = vsel %vm435, %v451, 0.0
      %v453 = vsel %vm436, %v450, 0.0
      %s454 = sld [smem:[#allocation4 + $0x7]]
      %s455 = sld [smem:[#allocation4 + $0x38]]
      %456 = vrot.lane.b32.xlu0 %v444, 3
      %v457 = vpop.permute.xlu0 %456
      %458 = vrot.lane.b32.xlu0 %v445, 3
      %v459 = vpop.permute.xlu0 %458
      %v460 = vsel %vm263, %v457, %v459
      %v461 = vsel %vm263, %v459, %v457
      %462 = vrot.lane.b32.xlu0 %v452, 3
      %v463 = vpop.permute.xlu0 %462
      %464 = vrot.lane.b32.xlu0 %v453, 3
      %v465 = vpop.permute.xlu0 %464
      %v466 = vsel %vm263, %v463, %v465
      %v467 = vsel %vm263, %v465, %v463
      %v468 = vstv %s454
      %v469 = vmul.f32 %v468, %v461
      %v470 = vmul.f32 %v468, %v460
      %v471 = vstv %s455
      %v472 = vmul.f32 %v471, %v467
      %v473 = vmul.f32 %v471, %v466
      %v474 = vadd.f32 %v469, %v472
      %v475 = vadd.f32 %v470, %v473
      %v476 = vsel %vm200, %v474, 0.0
      %v477 = vsel %vm201, %v475, 0.0
      %v478 = vadd.f32 %v429, %v476
      %v479 = vadd.f32 %v430, %v477
      %s480 = sld [smem:[#allocation4 + $0x8]]
      %s481 = sld [smem:[#allocation4 + $0x39]]
      %482 = vrot.lane.b32.xlu0 %v444, 2
      %v483 = vpop.permute.xlu0 %482
      %484 = vrot.lane.b32.xlu0 %v445, 2
      %v485 = vpop.permute.xlu0 %484
      %v486 = vsel %vm290, %v483, %v485
      %v487 = vsel %vm290, %v485, %v483
      %488 = vrot.lane.b32.xlu0 %v452, 2
      %v489 = vpop.permute.xlu0 %488
      %490 = vrot.lane.b32.xlu0 %v453, 2
      %v491 = vpop.permute.xlu0 %490
      %v492 = vsel %vm290, %v489, %v491
      %v493 = vsel %vm290, %v491, %v489
      %v494 = vstv %s480
      %v495 = vmul.f32 %v494, %v487
      %v496 = vmul.f32 %v494, %v486
      %v497 = vstv %s481
      %v498 = vmul.f32 %v497, %v493
      %v499 = vmul.f32 %v497, %v492
      %v500 = vadd.f32 %v495, %v498
      %v501 = vadd.f32 %v496, %v499
      %v502 = vsel %vm202, %v500, 0.0
      %v503 = vsel %vm203, %v501, 0.0
      %v504 = vadd.f32 %v478, %v502
      %v505 = vadd.f32 %v479, %v503
      %s506 = sld [smem:[#allocation4 + $0x9]]
      %s507 = sld [smem:[#allocation4 + $0x3a]]
      %508 = vrot.lane.b32.xlu0 %v444, 1
      %v509 = vpop.permute.xlu0 %508
      %510 = vrot.lane.b32.xlu0 %v445, 1
      %v511 = vpop.permute.xlu0 %510
      %v512 = vsel %vm317, %v509, %v511
      %v513 = vsel %vm317, %v511, %v509
      %514 = vrot.lane.b32.xlu0 %v452, 1
      %v515 = vpop.permute.xlu0 %514
      %516 = vrot.lane.b32.xlu0 %v453, 1
      %v517 = vpop.permute.xlu0 %516
      %v518 = vsel %vm317, %v515, %v517
      %v519 = vsel %vm317, %v517, %v515
      %v520 = vstv %s506
      %v521 = vmul.f32 %v520, %v513
      %v522 = vmul.f32 %v520, %v512
      %v523 = vstv %s507
      %v524 = vmul.f32 %v523, %v519
      %v525 = vmul.f32 %v523, %v518
      %v526 = vadd.f32 %v521, %v524
      %v527 = vadd.f32 %v522, %v525
      %v528 = vsel %vm204, %v526, 0.0
      %v529 = vsel %vm205, %v527, 0.0
      %v530 = vadd.f32 %v504, %v528
      %v531 = vadd.f32 %v505, %v529
      %s532 = sld [smem:[#allocation4 + $0xa]]
      %s533 = sld [smem:[#allocation4 + $0x3b]]
      %v534 = vstv %s532
      %v535 = vmul.f32 %v534, %v444
      %v536 = vmul.f32 %v534, %v445
      %v537 = vstv %s533
      %v538 = vmul.f32 %v537, %v452
      %v539 = vmul.f32 %v537, %v453
      %v540 = vadd.f32 %v535, %v538
      %v541 = vadd.f32 %v536, %v539
      %v542 = vadd.f32 %v530, %v540
      %v543 = vadd.f32 %v531, %v541
      %s544 = sld [smem:[#allocation4 + $0xb]]
      %s545 = sld [smem:[#allocation4 + $0x3c]]
      %546 = vrot.lane.b32.xlu0 %v444, 127
      %v547 = vpop.permute.xlu0 %546
      %548 = vrot.lane.b32.xlu0 %v445, 127
      %v549 = vpop.permute.xlu0 %548
      %v550 = vsel %vm356, %v547, %v549
      %v551 = vsel %vm356, %v549, %v547
      %552 = vrot.lane.b32.xlu0 %v452, 127
      %v553 = vpop.permute.xlu0 %552
      %554 = vrot.lane.b32.xlu0 %v453, 127
      %v555 = vpop.permute.xlu0 %554
      %v556 = vsel %vm356, %v553, %v555
      %v557 = vsel %vm356, %v555, %v553
      %v558 = vstv %s544
      %v559 = vmul.f32 %v558, %v550
      %v560 = vmul.f32 %v558, %v551
      %v561 = vstv %s545
      %v562 = vmul.f32 %v561, %v556
      %v563 = vmul.f32 %v561, %v557
      %v564 = vadd.f32 %v559, %v562
      %v565 = vadd.f32 %v560, %v563
      %v566 = vsel %vm206, %v564, 0.0
      %v567 = vsel %vm207, %v565, 0.0
      %v568 = vadd.f32 %v542, %v566
      %v569 = vadd.f32 %v543, %v567
      %s570 = sld [smem:[#allocation4 + $0xc]]
      %s571 = sld [smem:[#allocation4 + $0x3d]]
      %572 = vrot.lane.b32.xlu0 %v444, 126
      %v573 = vpop.permute.xlu0 %572
      %574 = vrot.lane.b32.xlu0 %v445, 126
      %v575 = vpop.permute.xlu0 %574
      %v576 = vsel %vm383, %v573, %v575
      %v577 = vsel %vm383, %v575, %v573
      %578 = vrot.lane.b32.xlu0 %v452, 126
      %v579 = vpop.permute.xlu0 %578
      %580 = vrot.lane.b32.xlu0 %v453, 126
      %v581 = vpop.permute.xlu0 %580
      %v582 = vsel %vm383, %v579, %v581
      %v583 = vsel %vm383, %v581, %v579
      %v584 = vstv %s570
      %v585 = vmul.f32 %v584, %v576
      %v586 = vmul.f32 %v584, %v577
      %v587 = vstv %s571
      %v588 = vmul.f32 %v587, %v582
      %v589 = vmul.f32 %v587, %v583
      %v590 = vadd.f32 %v585, %v588
      %v591 = vadd.f32 %v586, %v589
      %v592 = vsel %vm208, %v590, 0.0
      %v593 = vsel %vm209, %v591, 0.0
      %v594 = vadd.f32 %v568, %v592
      %v595 = vadd.f32 %v569, %v593
      %s596 = sld [smem:[#allocation4 + $0xd]]
      %s597 = sld [smem:[#allocation4 + $0x3e]]
      %598 = vrot.lane.b32.xlu0 %v444, 125
      %v599 = vpop.permute.xlu0 %598
      %600 = vrot.lane.b32.xlu0 %v445, 125
      %v601 = vpop.permute.xlu0 %600
      %v602 = vsel %vm410, %v599, %v601
      %v603 = vsel %vm410, %v601, %v599
      %604 = vrot.lane.b32.xlu0 %v452, 125
      %v605 = vpop.permute.xlu0 %604
      %606 = vrot.lane.b32.xlu0 %v453, 125
      %v607 = vpop.permute.xlu0 %606
      %v608 = vsel %vm410, %v605, %v607
      %v609 = vsel %vm410, %v607, %v605
      %v610 = vstv %s596
      %v611 = vmul.f32 %v610, %v602
      %v612 = vmul.f32 %v610, %v603
      %v613 = vstv %s597
      %v614 = vmul.f32 %v613, %v608
      %v615 = vmul.f32 %v613, %v609
      %v616 = vadd.f32 %v611, %v614
      %v617 = vadd.f32 %v612, %v615
      %v618 = vsel %vm210, %v616, 0.0
      %v619 = vsel %vm211, %v617, 0.0
      %v620 = vadd.f32 %v594, %v618
      %v621 = vadd.f32 %v595, %v619
      %vm622 = vcmp.ge.f32.partialorder %v194, 1.0
      %vm623 = vcmp.ge.f32.partialorder %v195, 1.0
      %vm624 = vcmp.lt.f32.partialorder %v194, 17.0
      %vm625 = vcmp.lt.f32.partialorder %v195, 17.0
      %vm626 = vmand %vm622, %vm624
      %vm627 = vmand %vm623, %vm625
      %628 = vrot.lane.b32.xlu0 %v225, 16
      %v629 = vpop.permute.xlu0 %628
      %630 = vrot.lane.b32.xlu0 %v226, 16
      %v631 = vpop.permute.xlu0 %630
      %vm632 = vcmp.lt.s32.totalorder %v186, 16
      %v633 = vsel %vm632, %v629, %v631
      %v634 = vsel %vm632, %v631, %v629
      %v635 = vsel %vm626, %v634, 0.0
      %v636 = vsel %vm627, %v633, 0.0
      %637 = vrot.lane.b32.xlu0 %v245, 16
      %v638 = vpop.permute.xlu0 %637
      %639 = vrot.lane.b32.xlu0 %v246, 16
      %v640 = vpop.permute.xlu0 %639
      %v641 = vsel %vm632, %v638, %v640
      %v642 = vsel %vm632, %v640, %v638
      %v643 = vsel %vm626, %v642, 0.0
      %v644 = vsel %vm627, %v641, 0.0
      %s645 = sld [smem:[#allocation4 + $0xe]]
      %s646 = sld [smem:[#allocation4 + $0x3f]]
      %647 = vrot.lane.b32.xlu0 %v635, 3
      %v648 = vpop.permute.xlu0 %647
      %649 = vrot.lane.b32.xlu0 %v636, 3
      %v650 = vpop.permute.xlu0 %649
      %v651 = vsel %vm263, %v648, %v650
      %v652 = vsel %vm263, %v650, %v648
      %653 = vrot.lane.b32.xlu0 %v643, 3
      %v654 = vpop.permute.xlu0 %653
      %655 = vrot.lane.b32.xlu0 %v644, 3
      %v656 = vpop.permute.xlu0 %655
      %v657 = vsel %vm263, %v654, %v656
      %v658 = vsel %vm263, %v656, %v654
      %v659 = vstv %s645
      %v660 = vmul.f32 %v659, %v652
      %v661 = vmul.f32 %v659, %v651
      %v662 = vstv %s646
      %v663 = vmul.f32 %v662, %v658
      %v664 = vmul.f32 %v662, %v657
      %v665 = vadd.f32 %v660, %v663
      %v666 = vadd.f32 %v661, %v664
      %v667 = vsel %vm200, %v665, 0.0
      %v668 = vsel %vm201, %v666, 0.0
      %v669 = vadd.f32 %v620, %v667
      %v670 = vadd.f32 %v621, %v668
      %s671 = sld [smem:[#allocation4 + $0xf]]
      %s672 = sld [smem:[#allocation4 + $0x40]]
      %673 = vrot.lane.b32.xlu0 %v635, 2
      %v674 = vpop.permute.xlu0 %673
      %675 = vrot.lane.b32.xlu0 %v636, 2
      %v676 = vpop.permute.xlu0 %675
      %v677 = vsel %vm290, %v674, %v676
      %v678 = vsel %vm290, %v676, %v674
      %679 = vrot.lane.b32.xlu0 %v643, 2
      %v680 = vpop.permute.xlu0 %679
      %681 = vrot.lane.b32.xlu0 %v644, 2
      %v682 = vpop.permute.xlu0 %681
      %v683 = vsel %vm290, %v680, %v682
      %v684 = vsel %vm290, %v682, %v680
      %v685 = vstv %s671
      %v686 = vmul.f32 %v685, %v678
      %v687 = vmul.f32 %v685, %v677
      %v688 = vstv %s672
      %v689 = vmul.f32 %v688, %v684
      %v690 = vmul.f32 %v688, %v683
      %v691 = vadd.f32 %v686, %v689
      %v692 = vadd.f32 %v687, %v690
      %v693 = vsel %vm202, %v691, 0.0
      %v694 = vsel %vm203, %v692, 0.0
      %v695 = vadd.f32 %v669, %v693
      %v696 = vadd.f32 %v670, %v694
      %s697 = sld [smem:[#allocation4 + $0x10]]
      %s698 = sld [smem:[#allocation4 + $0x41]]
      %699 = vrot.lane.b32.xlu0 %v635, 1
      %v700 = vpop.permute.xlu0 %699
      %701 = vrot.lane.b32.xlu0 %v636, 1
      %v702 = vpop.permute.xlu0 %701
      %v703 = vsel %vm317, %v700, %v702
      %v704 = vsel %vm317, %v702, %v700
      %705 = vrot.lane.b32.xlu0 %v643, 1
      %v706 = vpop.permute.xlu0 %705
      %707 = vrot.lane.b32.xlu0 %v644, 1
      %v708 = vpop.permute.xlu0 %707
      %v709 = vsel %vm317, %v706, %v708
      %v710 = vsel %vm317, %v708, %v706
      %v711 = vstv %s697
      %v712 = vmul.f32 %v711, %v704
      %v713 = vmul.f32 %v711, %v703
      %v714 = vstv %s698
      %v715 = vmul.f32 %v714, %v710
      %v716 = vmul.f32 %v714, %v709
      %v717 = vadd.f32 %v712, %v715
      %v718 = vadd.f32 %v713, %v716
      %v719 = vsel %vm204, %v717, 0.0
      %v720 = vsel %vm205, %v718, 0.0
      %v721 = vadd.f32 %v695, %v719
      %v722 = vadd.f32 %v696, %v720
      %s723 = sld [smem:[#allocation4 + $0x11]]
      %s724 = sld [smem:[#allocation4 + $0x42]]
      %v725 = vstv %s723
      %v726 = vmul.f32 %v725, %v635
      %v727 = vmul.f32 %v725, %v636
      %v728 = vstv %s724
      %v729 = vmul.f32 %v728, %v643
      %v730 = vmul.f32 %v728, %v644
      %v731 = vadd.f32 %v726, %v729
      %v732 = vadd.f32 %v727, %v730
      %v733 = vadd.f32 %v721, %v731
      %v734 = vadd.f32 %v722, %v732
      %s735 = sld [smem:[#allocation4 + $0x12]]
      %s736 = sld [smem:[#allocation4 + $0x43]]
      %737 = vrot.lane.b32.xlu0 %v635, 127
      %v738 = vpop.permute.xlu0 %737
      %739 = vrot.lane.b32.xlu0 %v636, 127
      %v740 = vpop.permute.xlu0 %739
      %v741 = vsel %vm356, %v738, %v740
      %v742 = vsel %vm356, %v740, %v738
      %743 = vrot.lane.b32.xlu0 %v643, 127
      %v744 = vpop.permute.xlu0 %743
      %745 = vrot.lane.b32.xlu0 %v644, 127
      %v746 = vpop.permute.xlu0 %745
      %v747 = vsel %vm356, %v744, %v746
      %v748 = vsel %vm356, %v746, %v744
      %v749 = vstv %s735
      %v750 = vmul.f32 %v749, %v741
      %v751 = vmul.f32 %v749, %v742
      %v752 = vstv %s736
      %v753 = vmul.f32 %v752, %v747
      %v754 = vmul.f32 %v752, %v748
      %v755 = vadd.f32 %v750, %v753
      %v756 = vadd.f32 %v751, %v754
      %v757 = vsel %vm206, %v755, 0.0
      %v758 = vsel %vm207, %v756, 0.0
      %v759 = vadd.f32 %v733, %v757
      %v760 = vadd.f32 %v734, %v758
      %s761 = sld [smem:[#allocation4 + $0x13]]
      %s762 = sld [smem:[#allocation4 + $0x44]]
      %763 = vrot.lane.b32.xlu0 %v635, 126
      %v764 = vpop.permute.xlu0 %763
      %765 = vrot.lane.b32.xlu0 %v636, 126
      %v766 = vpop.permute.xlu0 %765
      %v767 = vsel %vm383, %v764, %v766
      %v768 = vsel %vm383, %v766, %v764
      %769 = vrot.lane.b32.xlu0 %v643, 126
      %v770 = vpop.permute.xlu0 %769
      %771 = vrot.lane.b32.xlu0 %v644, 126
      %v772 = vpop.permute.xlu0 %771
      %v773 = vsel %vm383, %v770, %v772
      %v774 = vsel %vm383, %v772, %v770
      %v775 = vstv %s761
      %v776 = vmul.f32 %v775, %v767
      %v777 = vmul.f32 %v775, %v768
      %v778 = vstv %s762
      %v779 = vmul.f32 %v778, %v773
      %v780 = vmul.f32 %v778, %v774
      %v781 = vadd.f32 %v776, %v779
      %v782 = vadd.f32 %v777, %v780
      %v783 = vsel %vm208, %v781, 0.0
      %v784 = vsel %vm209, %v782, 0.0
      %v785 = vadd.f32 %v759, %v783
      %v786 = vadd.f32 %v760, %v784
      %s787 = sld [smem:[#allocation4 + $0x14]]
      %s788 = sld [smem:[#allocation4 + $0x45]]
      %789 = vrot.lane.b32.xlu0 %v635, 125
      %v790 = vpop.permute.xlu0 %789
      %791 = vrot.lane.b32.xlu0 %v636, 125
      %v792 = vpop.permute.xlu0 %791
      %v793 = vsel %vm410, %v790, %v792
      %v794 = vsel %vm410, %v792, %v790
      %795 = vrot.lane.b32.xlu0 %v643, 125
      %v796 = vpop.permute.xlu0 %795
      %797 = vrot.lane.b32.xlu0 %v644, 125
      %v798 = vpop.permute.xlu0 %797
      %v799 = vsel %vm410, %v796, %v798
      %v800 = vsel %vm410, %v798, %v796
      %v801 = vstv %s787
      %v802 = vmul.f32 %v801, %v793
      %v803 = vmul.f32 %v801, %v794
      %v804 = vstv %s788
      %v805 = vmul.f32 %v804, %v799
      %v806 = vmul.f32 %v804, %v800
      %v807 = vadd.f32 %v802, %v805
      %v808 = vadd.f32 %v803, %v806
      %v809 = vsel %vm210, %v807, 0.0
      %v810 = vsel %vm211, %v808, 0.0
      %v811 = vadd.f32 %v785, %v809
      %v812 = vadd.f32 %v786, %v810
      %s813 = sld [smem:[#allocation4 + $0x15]]
      %s814 = sld [smem:[#allocation4 + $0x46]]
      %815 = vrot.lane.b32.xlu0 %v225, 3
      %v816 = vpop.permute.xlu0 %815
      %817 = vrot.lane.b32.xlu0 %v226, 3
      %v818 = vpop.permute.xlu0 %817
      %v819 = vsel %vm263, %v816, %v818
      %v820 = vsel %vm263, %v818, %v816
      %821 = vrot.lane.b32.xlu0 %v245, 3
      %v822 = vpop.permute.xlu0 %821
      %823 = vrot.lane.b32.xlu0 %v246, 3
      %v824 = vpop.permute.xlu0 %823
      %v825 = vsel %vm263, %v822, %v824
      %v826 = vsel %vm263, %v824, %v822
      %v827 = vstv %s813
      %v828 = vmul.f32 %v827, %v820
      %v829 = vmul.f32 %v827, %v819
      %v830 = vstv %s814
      %v831 = vmul.f32 %v830, %v826
      %v832 = vmul.f32 %v830, %v825
      %v833 = vadd.f32 %v828, %v831
      %v834 = vadd.f32 %v829, %v832
      %v835 = vsel %vm200, %v833, 0.0
      %v836 = vsel %vm201, %v834, 0.0
      %v837 = vadd.f32 %v811, %v835
      %v838 = vadd.f32 %v812, %v836
      %s839 = sld [smem:[#allocation4 + $0x16]]
      %s840 = sld [smem:[#allocation4 + $0x47]]
      %841 = vrot.lane.b32.xlu0 %v225, 2
      %v842 = vpop.permute.xlu0 %841
      %843 = vrot.lane.b32.xlu0 %v226, 2
      %v844 = vpop.permute.xlu0 %843
      %v845 = vsel %vm290, %v842, %v844
      %v846 = vsel %vm290, %v844, %v842
      %847 = vrot.lane.b32.xlu0 %v245, 2
      %v848 = vpop.permute.xlu0 %847
      %849 = vrot.lane.b32.xlu0 %v246, 2
      %v850 = vpop.permute.xlu0 %849
      %v851 = vsel %vm290, %v848, %v850
      %v852 = vsel %vm290, %v850, %v848
      %v853 = vstv %s839
      %v854 = vmul.f32 %v853, %v846
      %v855 = vmul.f32 %v853, %v845
      %v856 = vstv %s840
      %v857 = vmul.f32 %v856, %v852
      %v858 = vmul.f32 %v856, %v851
      %v859 = vadd.f32 %v854, %v857
      %v860 = vadd.f32 %v855, %v858
      %v861 = vsel %vm202, %v859, 0.0
      %v862 = vsel %vm203, %v860, 0.0
      %v863 = vadd.f32 %v837, %v861
      %v864 = vadd.f32 %v838, %v862
      %s865 = sld [smem:[#allocation4 + $0x17]]
      %s866 = sld [smem:[#allocation4 + $0x48]]
      %867 = vrot.lane.b32.xlu0 %v225, 1
      %v868 = vpop.permute.xlu0 %867
      %869 = vrot.lane.b32.xlu0 %v226, 1
      %v870 = vpop.permute.xlu0 %869
      %v871 = vsel %vm317, %v868, %v870
      %v872 = vsel %vm317, %v870, %v868
      %873 = vrot.lane.b32.xlu0 %v245, 1
      %v874 = vpop.permute.xlu0 %873
      %875 = vrot.lane.b32.xlu0 %v246, 1
      %v876 = vpop.permute.xlu0 %875
      %v877 = vsel %vm317, %v874, %v876
      %v878 = vsel %vm317, %v876, %v874
      %v879 = vstv %s865
      %v880 = vmul.f32 %v879, %v872
      %v881 = vmul.f32 %v879, %v871
      %v882 = vstv %s866
      %v883 = vmul.f32 %v882, %v878
      %v884 = vmul.f32 %v882, %v877
      %v885 = vadd.f32 %v880, %v883
      %v886 = vadd.f32 %v881, %v884
      %v887 = vsel %vm204, %v885, 0.0
      %v888 = vsel %vm205, %v886, 0.0
      %v889 = vadd.f32 %v863, %v887
      %v890 = vadd.f32 %v864, %v888
      %s891 = sld [smem:[#allocation4 + $0x18]]
      %s892 = sld [smem:[#allocation4 + $0x49]]
      %v893 = vstv %s891
      %v894 = vmul.f32 %v893, %v183
      %v895 = vstv %s892
      %v896 = vmul.f32 %v895, %v184
      %v897 = vadd.f32 %v894, %v896
      %v900 = vunpack.c.l.s4 1983009808
      %v901 = vunpack.c.0.s8 %v900
      %v902 = vlaneseq
      %v903 = vshrl.u32 %v902, 7
      %v904 = vsub.s32 %v901, %v903
      %v905 = vrot.slane %v897, %v904
      %v906 = vcombine.high %v905, %v905
      %v909 = vadd.f32 %v889, %v905
      %v910 = vadd.f32 %v890, %v906
      %s911 = sld [smem:[#allocation4 + $0x19]]
      %s912 = sld [smem:[#allocation4 + $0x4a]]
      %913 = vrot.lane.b32.xlu0 %v225, 127
      %v914 = vpop.permute.xlu0 %913
      %915 = vrot.lane.b32.xlu0 %v226, 127
      %v916 = vpop.permute.xlu0 %915
      %v917 = vsel %vm356, %v914, %v916
      %v918 = vsel %vm356, %v916, %v914
      %919 = vrot.lane.b32.xlu0 %v245, 127
      %v920 = vpop.permute.xlu0 %919
      %921 = vrot.lane.b32.xlu0 %v246, 127
      %v922 = vpop.permute.xlu0 %921
      %v923 = vsel %vm356, %v920, %v922
      %v924 = vsel %vm356, %v922, %v920
      %v925 = vstv %s911
      %v926 = vmul.f32 %v925, %v917
      %v927 = vmul.f32 %v925, %v918
      %v928 = vstv %s912
      %v929 = vmul.f32 %v928, %v923
      %v930 = vmul.f32 %v928, %v924
      %v931 = vadd.f32 %v926, %v929
      %v932 = vadd.f32 %v927, %v930
      %v933 = vsel %vm206, %v931, 0.0
      %v934 = vsel %vm207, %v932, 0.0
      %v935 = vadd.f32 %v909, %v933
      %v936 = vadd.f32 %v910, %v934
      %s937 = sld [smem:[#allocation4 + $0x1a]]
      %s938 = sld [smem:[#allocation4 + $0x4b]]
      %939 = vrot.lane.b32.xlu0 %v225, 126
      %v940 = vpop.permute.xlu0 %939
      %941 = vrot.lane.b32.xlu0 %v226, 126
      %v942 = vpop.permute.xlu0 %941
      %v943 = vsel %vm383, %v940, %v942
      %v944 = vsel %vm383, %v942, %v940
      %945 = vrot.lane.b32.xlu0 %v245, 126
      %v946 = vpop.permute.xlu0 %945
      %947 = vrot.lane.b32.xlu0 %v246, 126
      %v948 = vpop.permute.xlu0 %947
      %v949 = vsel %vm383, %v946, %v948
      %v950 = vsel %vm383, %v948, %v946
      %v951 = vstv %s937
      %v952 = vmul.f32 %v951, %v943
      %v953 = vmul.f32 %v951, %v944
      %v954 = vstv %s938
      %v955 = vmul.f32 %v954, %v949
      %v956 = vmul.f32 %v954, %v950
      %v957 = vadd.f32 %v952, %v955
      %v958 = vadd.f32 %v953, %v956
      %v959 = vsel %vm208, %v957, 0.0
      %v960 = vsel %vm209, %v958, 0.0
      %v961 = vadd.f32 %v935, %v959
      %v962 = vadd.f32 %v936, %v960
      %s963 = sld [smem:[#allocation4 + $0x1b]]
      %s964 = sld [smem:[#allocation4 + $0x4c]]
      %965 = vrot.lane.b32.xlu0 %v225, 125
      %v966 = vpop.permute.xlu0 %965
      %967 = vrot.lane.b32.xlu0 %v226, 125
      %v968 = vpop.permute.xlu0 %967
      %v969 = vsel %vm410, %v966, %v968
      %v970 = vsel %vm410, %v968, %v966
      %971 = vrot.lane.b32.xlu0 %v245, 125
      %v972 = vpop.permute.xlu0 %971
      %973 = vrot.lane.b32.xlu0 %v246, 125
      %v974 = vpop.permute.xlu0 %973
      %v975 = vsel %vm410, %v972, %v974
      %v976 = vsel %vm410, %v974, %v972
      %v977 = vstv %s963
      %v978 = vmul.f32 %v977, %v969
      %v979 = vmul.f32 %v977, %v970
      %v980 = vstv %s964
      %v981 = vmul.f32 %v980, %v975
      %v982 = vmul.f32 %v980, %v976
      %v983 = vadd.f32 %v978, %v981
      %v984 = vadd.f32 %v979, %v982
      %v985 = vsel %vm210, %v983, 0.0
      %v986 = vsel %vm211, %v984, 0.0
      %v987 = vadd.f32 %v961, %v985
      %v988 = vadd.f32 %v962, %v986
      %vm989 = vcmp.ge.f32.partialorder %v194, -1.0
      %vm990 = vcmp.ge.f32.partialorder %v195, -1.0
      %vm991 = vcmp.lt.f32.partialorder %v194, 15.0
      %vm992 = vcmp.lt.f32.partialorder %v195, 15.0
      %vm993 = vmand %vm989, %vm991
      %vm994 = vmand %vm990, %vm992
      %995 = vrot.lane.b32.xlu0 %v225, 112
      %v996 = vpop.permute.xlu0 %995
      %997 = vrot.lane.b32.xlu0 %v226, 112
      %v998 = vpop.permute.xlu0 %997
      %vm999 = vcmp.lt.s32.totalorder %v186, 112
      %v1000 = vsel %vm999, %v996, %v998
      %v1001 = vsel %vm999, %v998, %v996
      %v1002 = vsel %vm993, %v1000, 0.0
      %v1003 = vsel %vm994, %v1001, 0.0
      %1004 = vrot.lane.b32.xlu0 %v245, 112
      %v1005 = vpop.permute.xlu0 %1004
      %1006 = vrot.lane.b32.xlu0 %v246, 112
      %v1007 = vpop.permute.xlu0 %1006
      %v1008 = vsel %vm999, %v1005, %v1007
      %v1009 = vsel %vm999, %v1007, %v1005
      %v1010 = vsel %vm993, %v1008, 0.0
      %v1011 = vsel %vm994, %v1009, 0.0
      %s1012 = sld [smem:[#allocation4 + $0x1c]]
      %s1013 = sld [smem:[#allocation4 + $0x4d]]
      %1014 = vrot.lane.b32.xlu0 %v1002, 3
      %v1015 = vpop.permute.xlu0 %1014
      %1016 = vrot.lane.b32.xlu0 %v1003, 3
      %v1017 = vpop.permute.xlu0 %1016
      %v1018 = vsel %vm263, %v1015, %v1017
      %v1019 = vsel %vm263, %v1017, %v1015
      %1020 = vrot.lane.b32.xlu0 %v1010, 3
      %v1021 = vpop.permute.xlu0 %1020
      %1022 = vrot.lane.b32.xlu0 %v1011, 3
      %v1023 = vpop.permute.xlu0 %1022
      %v1024 = vsel %vm263, %v1021, %v1023
      %v1025 = vsel %vm263, %v1023, %v1021
      %v1026 = vstv %s1012
      %v1027 = vmul.f32 %v1026, %v1019
      %v1028 = vmul.f32 %v1026, %v1018
      %v1029 = vstv %s1013
      %v1030 = vmul.f32 %v1029, %v1025
      %v1031 = vmul.f32 %v1029, %v1024
      %v1032 = vadd.f32 %v1027, %v1030
      %v1033 = vadd.f32 %v1028, %v1031
      %v1034 = vsel %vm200, %v1032, 0.0
      %v1035 = vsel %vm201, %v1033, 0.0
      %v1036 = vadd.f32 %v987, %v1034
      %v1037 = vadd.f32 %v988, %v1035
      %s1038 = sld [smem:[#allocation4 + $0x1d]]
      %s1039 = sld [smem:[#allocation4 + $0x4e]]
      %1040 = vrot.lane.b32.xlu0 %v1002, 2
      %v1041 = vpop.permute.xlu0 %1040
      %1042 = vrot.lane.b32.xlu0 %v1003, 2
      %v1043 = vpop.permute.xlu0 %1042
      %v1044 = vsel %vm290, %v1041, %v1043
      %v1045 = vsel %vm290, %v1043, %v1041
      %1046 = vrot.lane.b32.xlu0 %v1010, 2
      %v1047 = vpop.permute.xlu0 %1046
      %1048 = vrot.lane.b32.xlu0 %v1011, 2
      %v1049 = vpop.permute.xlu0 %1048
      %v1050 = vsel %vm290, %v1047, %v1049
      %v1051 = vsel %vm290, %v1049, %v1047
      %v1052 = vstv %s1038
      %v1053 = vmul.f32 %v1052, %v1045
      %v1054 = vmul.f32 %v1052, %v1044
      %v1055 = vstv %s1039
      %v1056 = vmul.f32 %v1055, %v1051
      %v1057 = vmul.f32 %v1055, %v1050
      %v1058 = vadd.f32 %v1053, %v1056
      %v1059 = vadd.f32 %v1054, %v1057
      %v1060 = vsel %vm202, %v1058, 0.0
      %v1061 = vsel %vm203, %v1059, 0.0
      %v1062 = vadd.f32 %v1036, %v1060
      %v1063 = vadd.f32 %v1037, %v1061
      %s1064 = sld [smem:[#allocation4 + $0x1e]]
      %s1065 = sld [smem:[#allocation4 + $0x4f]]
      %1066 = vrot.lane.b32.xlu0 %v1002, 1
      %v1067 = vpop.permute.xlu0 %1066
      %1068 = vrot.lane.b32.xlu0 %v1003, 1
      %v1069 = vpop.permute.xlu0 %1068
      %v1070 = vsel %vm317, %v1067, %v1069
      %v1071 = vsel %vm317, %v1069, %v1067
      %1072 = vrot.lane.b32.xlu0 %v1010, 1
      %v1073 = vpop.permute.xlu0 %1072
      %1074 = vrot.lane.b32.xlu0 %v1011, 1
      %v1075 = vpop.permute.xlu0 %1074
      %v1076 = vsel %vm317, %v1073, %v1075
      %v1077 = vsel %vm317, %v1075, %v1073
      %v1078 = vstv %s1064
      %v1079 = vmul.f32 %v1078, %v1071
      %v1080 = vmul.f32 %v1078, %v1070
      %v1081 = vstv %s1065
      %v1082 = vmul.f32 %v1081, %v1077
      %v1083 = vmul.f32 %v1081, %v1076
      %v1084 = vadd.f32 %v1079, %v1082
      %v1085 = vadd.f32 %v1080, %v1083
      %v1086 = vsel %vm204, %v1084, 0.0
      %v1087 = vsel %vm205, %v1085, 0.0
      %v1088 = vadd.f32 %v1062, %v1086
      %v1089 = vadd.f32 %v1063, %v1087
      %s1090 = sld [smem:[#allocation4 + $0x1f]]
      %s1091 = sld [smem:[#allocation4 + $0x50]]
      %v1092 = vstv %s1090
      %v1093 = vmul.f32 %v1092, %v1002
      %v1094 = vmul.f32 %v1092, %v1003
      %v1095 = vstv %s1091
      %v1096 = vmul.f32 %v1095, %v1010
      %v1097 = vmul.f32 %v1095, %v1011
      %v1098 = vadd.f32 %v1093, %v1096
      %v1099 = vadd.f32 %v1094, %v1097
      %v1100 = vadd.f32 %v1088, %v1098
      %v1101 = vadd.f32 %v1089, %v1099
      %s1102 = sld [smem:[#allocation4 + $0x20]]
      %s1103 = sld [smem:[#allocation4 + $0x51]]
      %1104 = vrot.lane.b32.xlu0 %v1002, 127
      %v1105 = vpop.permute.xlu0 %1104
      %1106 = vrot.lane.b32.xlu0 %v1003, 127
      %v1107 = vpop.permute.xlu0 %1106
      %v1108 = vsel %vm356, %v1105, %v1107
      %v1109 = vsel %vm356, %v1107, %v1105
      %1110 = vrot.lane.b32.xlu0 %v1010, 127
      %v1111 = vpop.permute.xlu0 %1110
      %1112 = vrot.lane.b32.xlu0 %v1011, 127
      %v1113 = vpop.permute.xlu0 %1112
      %v1114 = vsel %vm356, %v1111, %v1113
      %v1115 = vsel %vm356, %v1113, %v1111
      %v1116 = vstv %s1102
      %v1117 = vmul.f32 %v1116, %v1108
      %v1118 = vmul.f32 %v1116, %v1109
      %v1119 = vstv %s1103
      %v1120 = vmul.f32 %v1119, %v1114
      %v1121 = vmul.f32 %v1119, %v1115
      %v1122 = vadd.f32 %v1117, %v1120
      %v1123 = vadd.f32 %v1118, %v1121
      %v1124 = vsel %vm206, %v1122, 0.0
      %v1125 = vsel %vm207, %v1123, 0.0
      %v1126 = vadd.f32 %v1100, %v1124
      %v1127 = vadd.f32 %v1101, %v1125
      %s1128 = sld [smem:[#allocation4 + $0x21]]
      %s1129 = sld [smem:[#allocation4 + $0x52]]
      %1130 = vrot.lane.b32.xlu0 %v1002, 126
      %v1131 = vpop.permute.xlu0 %1130
      %1132 = vrot.lane.b32.xlu0 %v1003, 126
      %v1133 = vpop.permute.xlu0 %1132
      %v1134 = vsel %vm383, %v1131, %v1133
      %v1135 = vsel %vm383, %v1133, %v1131
      %1136 = vrot.lane.b32.xlu0 %v1010, 126
      %v1137 = vpop.permute.xlu0 %1136
      %1138 = vrot.lane.b32.xlu0 %v1011, 126
      %v1139 = vpop.permute.xlu0 %1138
      %v1140 = vsel %vm383, %v1137, %v1139
      %v1141 = vsel %vm383, %v1139, %v1137
      %v1142 = vstv %s1128
      %v1143 = vmul.f32 %v1142, %v1134
      %v1144 = vmul.f32 %v1142, %v1135
      %v1145 = vstv %s1129
      %v1146 = vmul.f32 %v1145, %v1140
      %v1147 = vmul.f32 %v1145, %v1141
      %v1148 = vadd.f32 %v1143, %v1146
      %v1149 = vadd.f32 %v1144, %v1147
      %v1150 = vsel %vm208, %v1148, 0.0
      %v1151 = vsel %vm209, %v1149, 0.0
      %v1152 = vadd.f32 %v1126, %v1150
      %v1153 = vadd.f32 %v1127, %v1151
      %s1154 = sld [smem:[#allocation4 + $0x22]]
      %s1155 = sld [smem:[#allocation4 + $0x53]]
      %1156 = vrot.lane.b32.xlu0 %v1002, 125
      %v1157 = vpop.permute.xlu0 %1156
      %1158 = vrot.lane.b32.xlu0 %v1003, 125
      %v1159 = vpop.permute.xlu0 %1158
      %v1160 = vsel %vm410, %v1157, %v1159
      %v1161 = vsel %vm410, %v1159, %v1157
      %1162 = vrot.lane.b32.xlu0 %v1010, 125
      %v1163 = vpop.permute.xlu0 %1162
      %1164 = vrot.lane.b32.xlu0 %v1011, 125
      %v1165 = vpop.permute.xlu0 %1164
      %v1166 = vsel %vm410, %v1163, %v1165
      %v1167 = vsel %vm410, %v1165, %v1163
      %v1168 = vstv %s1154
      %v1169 = vmul.f32 %v1168, %v1160
      %v1170 = vmul.f32 %v1168, %v1161
      %v1171 = vstv %s1155
      %v1172 = vmul.f32 %v1171, %v1166
      %v1173 = vmul.f32 %v1171, %v1167
      %v1174 = vadd.f32 %v1169, %v1172
      %v1175 = vadd.f32 %v1170, %v1173
      %v1176 = vsel %vm210, %v1174, 0.0
      %v1177 = vsel %vm211, %v1175, 0.0
      %v1178 = vadd.f32 %v1152, %v1176
      %v1179 = vadd.f32 %v1153, %v1177
      %vm1180 = vcmp.ge.f32.partialorder %v194, -2.0
      %vm1181 = vcmp.ge.f32.partialorder %v195, -2.0
      %vm1182 = vcmp.lt.f32.partialorder %v194, 14.0
      %vm1183 = vcmp.lt.f32.partialorder %v195, 14.0
      %vm1184 = vmand %vm1180, %vm1182
      %vm1185 = vmand %vm1181, %vm1183
      %1186 = vrot.lane.b32.xlu0 %v225, 96
      %v1187 = vpop.permute.xlu0 %1186
      %1188 = vrot.lane.b32.xlu0 %v226, 96
      %v1189 = vpop.permute.xlu0 %1188
      %vm1190 = vcmp.lt.s32.totalorder %v186, 96
      %v1191 = vsel %vm1190, %v1187, %v1189
      %v1192 = vsel %vm1190, %v1189, %v1187
      %v1193 = vsel %vm1184, %v1191, 0.0
      %v1194 = vsel %vm1185, %v1192, 0.0
      %1195 = vrot.lane.b32.xlu0 %v245, 96
      %v1196 = vpop.permute.xlu0 %1195
      %1197 = vrot.lane.b32.xlu0 %v246, 96
      %v1198 = vpop.permute.xlu0 %1197
      %v1199 = vsel %vm1190, %v1196, %v1198
      %v1200 = vsel %vm1190, %v1198, %v1196
      %v1201 = vsel %vm1184, %v1199, 0.0
      %v1202 = vsel %vm1185, %v1200, 0.0
      %s1203 = sld [smem:[#allocation4 + $0x23]]
      %s1204 = sld [smem:[#allocation4 + $0x54]]
      %1205 = vrot.lane.b32.xlu0 %v1193, 3
      %v1206 = vpop.permute.xlu0 %1205
      %1207 = vrot.lane.b32.xlu0 %v1194, 3
      %v1208 = vpop.permute.xlu0 %1207
      %v1209 = vsel %vm263, %v1206, %v1208
      %v1210 = vsel %vm263, %v1208, %v1206
      %1211 = vrot.lane.b32.xlu0 %v1201, 3
      %v1212 = vpop.permute.xlu0 %1211
      %1213 = vrot.lane.b32.xlu0 %v1202, 3
      %v1214 = vpop.permute.xlu0 %1213
      %v1215 = vsel %vm263, %v1212, %v1214
      %v1216 = vsel %vm263, %v1214, %v1212
      %v1217 = vstv %s1203
      %v1218 = vmul.f32 %v1217, %v1210
      %v1219 = vmul.f32 %v1217, %v1209
      %v1220 = vstv %s1204
      %v1221 = vmul.f32 %v1220, %v1216
      %v1222 = vmul.f32 %v1220, %v1215
      %v1223 = vadd.f32 %v1218, %v1221
      %v1224 = vadd.f32 %v1219, %v1222
      %v1225 = vsel %vm200, %v1223, 0.0
      %v1226 = vsel %vm201, %v1224, 0.0
      %v1227 = vadd.f32 %v1178, %v1225
      %v1228 = vadd.f32 %v1179, %v1226
      %s1229 = sld [smem:[#allocation4 + $0x24]]
      %s1230 = sld [smem:[#allocation4 + $0x55]]
      %1231 = vrot.lane.b32.xlu0 %v1193, 2
      %v1232 = vpop.permute.xlu0 %1231
      %1233 = vrot.lane.b32.xlu0 %v1194, 2
      %v1234 = vpop.permute.xlu0 %1233
      %v1235 = vsel %vm290, %v1232, %v1234
      %v1236 = vsel %vm290, %v1234, %v1232
      %1237 = vrot.lane.b32.xlu0 %v1201, 2
      %v1238 = vpop.permute.xlu0 %1237
      %1239 = vrot.lane.b32.xlu0 %v1202, 2
      %v1240 = vpop.permute.xlu0 %1239
      %v1241 = vsel %vm290, %v1238, %v1240
      %v1242 = vsel %vm290, %v1240, %v1238
      %v1243 = vstv %s1229
      %v1244 = vmul.f32 %v1243, %v1236
      %v1245 = vmul.f32 %v1243, %v1235
      %v1246 = vstv %s1230
      %v1247 = vmul.f32 %v1246, %v1242
      %v1248 = vmul.f32 %v1246, %v1241
      %v1249 = vadd.f32 %v1244, %v1247
      %v1250 = vadd.f32 %v1245, %v1248
      %v1251 = vsel %vm202, %v1249, 0.0
      %v1252 = vsel %vm203, %v1250, 0.0
      %v1253 = vadd.f32 %v1227, %v1251
      %v1254 = vadd.f32 %v1228, %v1252
      %s1255 = sld [smem:[#allocation4 + $0x25]]
      %s1256 = sld [smem:[#allocation4 + $0x56]]
      %1257 = vrot.lane.b32.xlu0 %v1193, 1
      %v1258 = vpop.permute.xlu0 %1257
      %1259 = vrot.lane.b32.xlu0 %v1194, 1
      %v1260 = vpop.permute.xlu0 %1259
      %v1261 = vsel %vm317, %v1258, %v1260
      %v1262 = vsel %vm317, %v1260, %v1258
      %1263 = vrot.lane.b32.xlu0 %v1201, 1
      %v1264 = vpop.permute.xlu0 %1263
      %1265 = vrot.lane.b32.xlu0 %v1202, 1
      %v1266 = vpop.permute.xlu0 %1265
      %v1267 = vsel %vm317, %v1264, %v1266
      %v1268 = vsel %vm317, %v1266, %v1264
      %v1269 = vstv %s1255
      %v1270 = vmul.f32 %v1269, %v1262
      %v1271 = vmul.f32 %v1269, %v1261
      %v1272 = vstv %s1256
      %v1273 = vmul.f32 %v1272, %v1268
      %v1274 = vmul.f32 %v1272, %v1267
      %v1275 = vadd.f32 %v1270, %v1273
      %v1276 = vadd.f32 %v1271, %v1274
      %v1277 = vsel %vm204, %v1275, 0.0
      %v1278 = vsel %vm205, %v1276, 0.0
      %v1279 = vadd.f32 %v1253, %v1277
      %v1280 = vadd.f32 %v1254, %v1278
      %s1281 = sld [smem:[#allocation4 + $0x26]]
      %s1282 = sld [smem:[#allocation4 + $0x57]]
      %v1283 = vstv %s1281
      %v1284 = vmul.f32 %v1283, %v1193
      %v1285 = vmul.f32 %v1283, %v1194
      %v1286 = vstv %s1282
      %v1287 = vmul.f32 %v1286, %v1201
      %v1288 = vmul.f32 %v1286, %v1202
      %v1289 = vadd.f32 %v1284, %v1287
      %v1290 = vadd.f32 %v1285, %v1288
      %v1291 = vadd.f32 %v1279, %v1289
      %v1292 = vadd.f32 %v1280, %v1290
      %s1293 = sld [smem:[#allocation4 + $0x27]]
      %s1294 = sld [smem:[#allocation4 + $0x58]]
      %1295 = vrot.lane.b32.xlu0 %v1193, 127
      %v1296 = vpop.permute.xlu0 %1295
      %1297 = vrot.lane.b32.xlu0 %v1194, 127
      %v1298 = vpop.permute.xlu0 %1297
      %v1299 = vsel %vm356, %v1296, %v1298
      %v1300 = vsel %vm356, %v1298, %v1296
      %1301 = vrot.lane.b32.xlu0 %v1201, 127
      %v1302 = vpop.permute.xlu0 %1301
      %1303 = vrot.lane.b32.xlu0 %v1202, 127
      %v1304 = vpop.permute.xlu0 %1303
      %v1305 = vsel %vm356, %v1302, %v1304
      %v1306 = vsel %vm356, %v1304, %v1302
      %v1307 = vstv %s1293
      %v1308 = vmul.f32 %v1307, %v1299
      %v1309 = vmul.f32 %v1307, %v1300
      %v1310 = vstv %s1294
      %v1311 = vmul.f32 %v1310, %v1305
      %v1312 = vmul.f32 %v1310, %v1306
      %v1313 = vadd.f32 %v1308, %v1311
      %v1314 = vadd.f32 %v1309, %v1312
      %v1315 = vsel %vm206, %v1313, 0.0
      %v1316 = vsel %vm207, %v1314, 0.0
      %v1317 = vadd.f32 %v1291, %v1315
      %v1318 = vadd.f32 %v1292, %v1316
      %s1319 = sld [smem:[#allocation4 + $0x28]]
      %s1320 = sld [smem:[#allocation4 + $0x59]]
      %1321 = vrot.lane.b32.xlu0 %v1193, 126
      %v1322 = vpop.permute.xlu0 %1321
      %1323 = vrot.lane.b32.xlu0 %v1194, 126
      %v1324 = vpop.permute.xlu0 %1323
      %v1325 = vsel %vm383, %v1322, %v1324
      %v1326 = vsel %vm383, %v1324, %v1322
      %1327 = vrot.lane.b32.xlu0 %v1201, 126
      %v1328 = vpop.permute.xlu0 %1327
      %1329 = vrot.lane.b32.xlu0 %v1202, 126
      %v1330 = vpop.permute.xlu0 %1329
      %v1331 = vsel %vm383, %v1328, %v1330
      %v1332 = vsel %vm383, %v1330, %v1328
      %v1333 = vstv %s1319
      %v1334 = vmul.f32 %v1333, %v1325
      %v1335 = vmul.f32 %v1333, %v1326
      %v1336 = vstv %s1320
      %v1337 = vmul.f32 %v1336, %v1331
      %v1338 = vmul.f32 %v1336, %v1332
      %v1339 = vadd.f32 %v1334, %v1337
      %v1340 = vadd.f32 %v1335, %v1338
      %v1341 = vsel %vm208, %v1339, 0.0
      %v1342 = vsel %vm209, %v1340, 0.0
      %v1343 = vadd.f32 %v1317, %v1341
      %v1344 = vadd.f32 %v1318, %v1342
      %s1345 = sld [smem:[#allocation4 + $0x29]]
      %s1346 = sld [smem:[#allocation4 + $0x5a]]
      %1347 = vrot.lane.b32.xlu0 %v1193, 125
      %v1348 = vpop.permute.xlu0 %1347
      %1349 = vrot.lane.b32.xlu0 %v1194, 125
      %v1350 = vpop.permute.xlu0 %1349
      %v1351 = vsel %vm410, %v1348, %v1350
      %v1352 = vsel %vm410, %v1350, %v1348
      %1353 = vrot.lane.b32.xlu0 %v1201, 125
      %v1354 = vpop.permute.xlu0 %1353
      %1355 = vrot.lane.b32.xlu0 %v1202, 125
      %v1356 = vpop.permute.xlu0 %1355
      %v1357 = vsel %vm410, %v1354, %v1356
      %v1358 = vsel %vm410, %v1356, %v1354
      %v1359 = vstv %s1345
      %v1360 = vmul.f32 %v1359, %v1351
      %v1361 = vmul.f32 %v1359, %v1352
      %v1362 = vstv %s1346
      %v1363 = vmul.f32 %v1362, %v1357
      %v1364 = vmul.f32 %v1362, %v1358
      %v1365 = vadd.f32 %v1360, %v1363
      %v1366 = vadd.f32 %v1361, %v1364
      %v1367 = vsel %vm210, %v1365, 0.0
      %v1368 = vsel %vm211, %v1366, 0.0
      %v1369 = vadd.f32 %v1343, %v1367
      %v1370 = vadd.f32 %v1344, %v1368
      %vm1371 = vcmp.ge.f32.partialorder %v194, -3.0
      %vm1372 = vcmp.ge.f32.partialorder %v195, -3.0
      %vm1373 = vcmp.lt.f32.partialorder %v194, 13.0
      %vm1374 = vcmp.lt.f32.partialorder %v195, 13.0
      %vm1375 = vmand %vm1371, %vm1373
      %vm1376 = vmand %vm1372, %vm1374
      %1377 = vrot.lane.b32.xlu0 %v225, 80
      %v1378 = vpop.permute.xlu0 %1377
      %1379 = vrot.lane.b32.xlu0 %v226, 80
      %v1380 = vpop.permute.xlu0 %1379
      %vm1381 = vcmp.lt.s32.totalorder %v186, 80
      %v1382 = vsel %vm1381, %v1378, %v1380
      %v1383 = vsel %vm1381, %v1380, %v1378
      %v1384 = vsel %vm1375, %v1382, 0.0
      %v1385 = vsel %vm1376, %v1383, 0.0
      %1386 = vrot.lane.b32.xlu0 %v245, 80
      %v1387 = vpop.permute.xlu0 %1386
      %1388 = vrot.lane.b32.xlu0 %v246, 80
      %v1389 = vpop.permute.xlu0 %1388
      %v1390 = vsel %vm1381, %v1387, %v1389
      %v1391 = vsel %vm1381, %v1389, %v1387
      %v1392 = vsel %vm1375, %v1390, 0.0
      %v1393 = vsel %vm1376, %v1391, 0.0
      %s1394 = sld [smem:[#allocation4 + $0x2a]]
      %s1395 = sld [smem:[#allocation4 + $0x5b]]
      %1396 = vrot.lane.b32.xlu0 %v1384, 3
      %v1397 = vpop.permute.xlu0 %1396
      %1398 = vrot.lane.b32.xlu0 %v1385, 3
      %v1399 = vpop.permute.xlu0 %1398
      %v1400 = vsel %vm263, %v1397, %v1399
      %v1401 = vsel %vm263, %v1399, %v1397
      %1402 = vrot.lane.b32.xlu0 %v1392, 3
      %v1403 = vpop.permute.xlu0 %1402
      %1404 = vrot.lane.b32.xlu0 %v1393, 3
      %v1405 = vpop.permute.xlu0 %1404
      %v1406 = vsel %vm263, %v1403, %v1405
      %v1407 = vsel %vm263, %v1405, %v1403
      %v1408 = vstv %s1394
      %v1409 = vmul.f32 %v1408, %v1401
      %v1410 = vmul.f32 %v1408, %v1400
      %v1411 = vstv %s1395
      %v1412 = vmul.f32 %v1411, %v1407
      %v1413 = vmul.f32 %v1411, %v1406
      %v1414 = vadd.f32 %v1409, %v1412
      %v1415 = vadd.f32 %v1410, %v1413
      %v1416 = vsel %vm200, %v1414, 0.0
      %v1417 = vsel %vm201, %v1415, 0.0
      %v1418 = vadd.f32 %v1369, %v1416
      %v1419 = vadd.f32 %v1370, %v1417
      %s1420 = sld [smem:[#allocation4 + $0x2b]]
      %s1421 = sld [smem:[#allocation4 + $0x5c]]
      %1422 = vrot.lane.b32.xlu0 %v1384, 2
      %v1423 = vpop.permute.xlu0 %1422
      %1424 = vrot.lane.b32.xlu0 %v1385, 2
      %v1425 = vpop.permute.xlu0 %1424
      %v1426 = vsel %vm290, %v1423, %v1425
      %v1427 = vsel %vm290, %v1425, %v1423
      %1428 = vrot.lane.b32.xlu0 %v1392, 2
      %v1429 = vpop.permute.xlu0 %1428
      %1430 = vrot.lane.b32.xlu0 %v1393, 2
      %v1431 = vpop.permute.xlu0 %1430
      %v1432 = vsel %vm290, %v1429, %v1431
      %v1433 = vsel %vm290, %v1431, %v1429
      %v1434 = vstv %s1420
      %v1435 = vmul.f32 %v1434, %v1427
      %v1436 = vmul.f32 %v1434, %v1426
      %v1437 = vstv %s1421
      %v1438 = vmul.f32 %v1437, %v1433
      %v1439 = vmul.f32 %v1437, %v1432
      %v1440 = vadd.f32 %v1435, %v1438
      %v1441 = vadd.f32 %v1436, %v1439
      %v1442 = vsel %vm202, %v1440, 0.0
      %v1443 = vsel %vm203, %v1441, 0.0
      %v1444 = vadd.f32 %v1418, %v1442
      %v1445 = vadd.f32 %v1419, %v1443
      %s1446 = sld [smem:[#allocation4 + $0x2c]]
      %s1447 = sld [smem:[#allocation4 + $0x5d]]
      %1448 = vrot.lane.b32.xlu0 %v1384, 1
      %v1449 = vpop.permute.xlu0 %1448
      %1450 = vrot.lane.b32.xlu0 %v1385, 1
      %v1451 = vpop.permute.xlu0 %1450
      %v1452 = vsel %vm317, %v1449, %v1451
      %v1453 = vsel %vm317, %v1451, %v1449
      %1454 = vrot.lane.b32.xlu0 %v1392, 1
      %v1455 = vpop.permute.xlu0 %1454
      %1456 = vrot.lane.b32.xlu0 %v1393, 1
      %v1457 = vpop.permute.xlu0 %1456
      %v1458 = vsel %vm317, %v1455, %v1457
      %v1459 = vsel %vm317, %v1457, %v1455
      %v1460 = vstv %s1446
      %v1461 = vmul.f32 %v1460, %v1453
      %v1462 = vmul.f32 %v1460, %v1452
      %v1463 = vstv %s1447
      %v1464 = vmul.f32 %v1463, %v1459
      %v1465 = vmul.f32 %v1463, %v1458
      %v1466 = vadd.f32 %v1461, %v1464
      %v1467 = vadd.f32 %v1462, %v1465
      %v1468 = vsel %vm204, %v1466, 0.0
      %v1469 = vsel %vm205, %v1467, 0.0
      %v1470 = vadd.f32 %v1444, %v1468
      %v1471 = vadd.f32 %v1445, %v1469
      %s1472 = sld [smem:[#allocation4 + $0x2d]]
      %s1473 = sld [smem:[#allocation4 + $0x5e]]
      %v1474 = vstv %s1472
      %v1475 = vmul.f32 %v1474, %v1384
      %v1476 = vmul.f32 %v1474, %v1385
      %v1477 = vstv %s1473
      %v1478 = vmul.f32 %v1477, %v1392
      %v1479 = vmul.f32 %v1477, %v1393
      %v1480 = vadd.f32 %v1475, %v1478
      %v1481 = vadd.f32 %v1476, %v1479
      %v1482 = vadd.f32 %v1470, %v1480
      %v1483 = vadd.f32 %v1471, %v1481
      %s1484 = sld [smem:[#allocation4 + $0x2e]]
      %s1485 = sld [smem:[#allocation4 + $0x5f]]
      %1486 = vrot.lane.b32.xlu0 %v1384, 127
      %v1487 = vpop.permute.xlu0 %1486
      %1488 = vrot.lane.b32.xlu0 %v1385, 127
      %v1489 = vpop.permute.xlu0 %1488
      %v1490 = vsel %vm356, %v1487, %v1489
      %v1491 = vsel %vm356, %v1489, %v1487
      %1492 = vrot.lane.b32.xlu0 %v1392, 127
      %v1493 = vpop.permute.xlu0 %1492
      %1494 = vrot.lane.b32.xlu0 %v1393, 127
      %v1495 = vpop.permute.xlu0 %1494
      %v1496 = vsel %vm356, %v1493, %v1495
      %v1497 = vsel %vm356, %v1495, %v1493
      %v1498 = vstv %s1484
      %v1499 = vmul.f32 %v1498, %v1490
      %v1500 = vmul.f32 %v1498, %v1491
      %v1501 = vstv %s1485
      %v1502 = vmul.f32 %v1501, %v1496
      %v1503 = vmul.f32 %v1501, %v1497
      %v1504 = vadd.f32 %v1499, %v1502
      %v1505 = vadd.f32 %v1500, %v1503
      %v1506 = vsel %vm206, %v1504, 0.0
      %v1507 = vsel %vm207, %v1505, 0.0
      %v1508 = vadd.f32 %v1482, %v1506
      %v1509 = vadd.f32 %v1483, %v1507
      %s1510 = sld [smem:[#allocation4 + $0x2f]]
      %s1511 = sld [smem:[#allocation4 + $0x60]]
      %1512 = vrot.lane.b32.xlu0 %v1384, 126
      %v1513 = vpop.permute.xlu0 %1512
      %1514 = vrot.lane.b32.xlu0 %v1385, 126
      %v1515 = vpop.permute.xlu0 %1514
      %v1516 = vsel %vm383, %v1513, %v1515
      %v1517 = vsel %vm383, %v1515, %v1513
      %1518 = vrot.lane.b32.xlu0 %v1392, 126
      %v1519 = vpop.permute.xlu0 %1518
      %1520 = vrot.lane.b32.xlu0 %v1393, 126
      %v1521 = vpop.permute.xlu0 %1520
      %v1522 = vsel %vm383, %v1519, %v1521
      %v1523 = vsel %vm383, %v1521, %v1519
      %v1524 = vstv %s1510
      %v1525 = vmul.f32 %v1524, %v1516
      %v1526 = vmul.f32 %v1524, %v1517
      %v1527 = vstv %s1511
      %v1528 = vmul.f32 %v1527, %v1522
      %v1529 = vmul.f32 %v1527, %v1523
      %v1530 = vadd.f32 %v1525, %v1528
      %v1531 = vadd.f32 %v1526, %v1529
      %v1532 = vsel %vm208, %v1530, 0.0
      %v1533 = vsel %vm209, %v1531, 0.0
      %v1534 = vadd.f32 %v1508, %v1532
      %v1535 = vadd.f32 %v1509, %v1533
      %s1536 = sld [smem:[#allocation4 + $0x30]]
      %s1537 = sld [smem:[#allocation4 + $0x61]]
      %1538 = vrot.lane.b32.xlu0 %v1384, 125
      %v1539 = vpop.permute.xlu0 %1538
      %1540 = vrot.lane.b32.xlu0 %v1385, 125
      %v1541 = vpop.permute.xlu0 %1540
      %v1542 = vsel %vm410, %v1539, %v1541
      %v1543 = vsel %vm410, %v1541, %v1539
      %1544 = vrot.lane.b32.xlu0 %v1392, 125
      %v1545 = vpop.permute.xlu0 %1544
      %1546 = vrot.lane.b32.xlu0 %v1393, 125
      %v1547 = vpop.permute.xlu0 %1546
      %v1548 = vsel %vm410, %v1545, %v1547
      %v1549 = vsel %vm410, %v1547, %v1545
      %v1550 = vstv %s1536
      %v1551 = vmul.f32 %v1550, %v1542
      %v1552 = vmul.f32 %v1550, %v1543
      %v1553 = vstv %s1537
      %v1554 = vmul.f32 %v1553, %v1548
      %v1555 = vmul.f32 %v1553, %v1549
      %v1556 = vadd.f32 %v1551, %v1554
      %v1557 = vadd.f32 %v1552, %v1555
      %v1558 = vsel %vm210, %v1556, 0.0
      %v1559 = vsel %vm211, %v1557, 0.0
      %v1560 = vadd.f32 %v1534, %v1558
      %v1561 = vadd.f32 %v1535, %v1559
      %v1562 = vxor.u32 %v1560, 2147483648
      %v1563 = vxor.u32 %v1561, 2147483648
      %v1564 = vmul.f32 %v1562, 1.442695
      %v1565 = vpow.pop %v1564
      %v1566 = vmul.f32 %v1563, 1.442695
      %v1567 = vpow.pop %v1566
      %v1568 = vadd.f32 %v1565, 1.0
      %v1569 = vadd.f32 %v1567, 1.0
      %v1570 = vrcp.pop %v1568
      %v1571 = vmul.f32 1.0, %v1570
      %v1572 = vrcp.pop %v1569
      %v1573 = vmul.f32 1.0, %v1572
      %v1576 = vcombine.low %v1571, %v1573
      %v1578 = vunpack.c.l.s4 1983009808
      %v1579 = vunpack.c.0.s8 %v1578
      %v1580 = vlaneseq
      %v1581 = vshrl.u32 %v1580, 7
      %v1582 = vsub.s32 %v1579, %v1581
      %v1583 = vrot.slane %v1576, %v1582
      %1585 = vst [vmem:[#allocation9] sm:$0xf] %v1583
    $region25: #{tpu_custom_call.1} parent=1 // pred_fallthru
      _
    // Predicated region
    $region26: #{tpu_custom_call.1} parent=1 // pred_check
      _
    $region27: #{tpu_custom_call.1} parent=1 // pred_check_branch
      %1587 = sbr.rel (0) target = $region29
    $region28: #{tpu_custom_call.1} parent=1 // pred_region
      %s1589 = ssub.s32 64, 64
      %1590 = vsyncadd [#allocation6], %s1589
      %s1592 = sshll.u32 [#allocation9], 4
      %s1593 = int_to_ptr.vmem [resolvable:$true] %s1592
      %1595 = dma.vmem_to_hbm [thread:$0]  %s1593, 64, %s2, [#allocation6]
    $region29: #{tpu_custom_call.1} parent=1 // pred_fallthru
      _
    // Predicated region
    $region30: #{tpu_custom_call.1} parent=1 // pred_check
      _
    $region31: #{tpu_custom_call.1} parent=1 // pred_check_branch
      %1597 = sbr.rel (0) target = $region33
    $region32: #{tpu_custom_call.1} parent=1 // pred_region
      %1598 = dma.done [#allocation6], 64
    $region33: #{tpu_custom_call.1} parent=1 // pred_fallthru
      _
    %1599 = vsyncpa [#allocation5], 1
    %1600 = vsyncpa [#allocation6], 1
    %1601 = vsyncpa [#allocation7], 1

</llo_original>
